<compile_context>
chip_gen: v7x
topology: tpu7x:2x2x1
jax: 0.10.0
libtpu: 0.0.40
codegen_flags: <defaults>
</compile_context>

<pallas_src>
import functools
import math

import jax
import jax.numpy as jnp
from jax.experimental import pallas as pl
from jax.experimental.pallas import tpu as pltpu


def _round_up(x, m):
    return ((x + m - 1) // m) * m


def _lcm(a, b):
    return a * b // math.gcd(a, b)


# ----------------------------------------------------------------------------
# Kernel
# ----------------------------------------------------------------------------
def _rnn_transition_kernel(groups, num_classes,
                           x_ref, a_ref, h0_ref,
                           w1x_ref, w1a_ref, b1_ref, w2_ref, b2_ref,
                           w_rzx_ref, w_rzh_ref, b_rz_ref,
                           w_in_ref, b_in_ref, w_hn_ref, b_hn_ref,
                           ones_ref,
                           h_out_ref, p_out_ref):
    """Fused: Dense(2 layers, ReLU) -> GRUCell -> grouped softmax (one batch tile)."""
    f32 = jnp.float32
    bf16 = jnp.bfloat16

    h0 = h0_ref[...]                                     # (TB, Hp) f32
    hp = h0.shape[-1]
    h0b = h0.astype(bf16)

    # ---- Dense layer 1: split matmul (x part + a part); x/a arrive in bf16 ----
    h1 = (jnp.dot(x_ref[...], w1x_ref[...], preferred_element_type=f32)
          + jnp.dot(a_ref[...], w1a_ref[...], preferred_element_type=f32)
          + b1_ref[...])
    h1 = jnp.maximum(h1, 0.0)

    # ---- Dense layer 2 ----
    h2 = jnp.dot(h1.astype(bf16), w2_ref[...], preferred_element_type=f32) + b2_ref[...]
    h2 = jnp.maximum(h2, 0.0)                            # (TB, L2p) f32
    h2b = h2.astype(bf16)

    # ---- GRUCell (PyTorch gate order r, z, n) ----
    # r/z gates: two split matmuls (input part + hidden part) -> no VMEM concat copy.
    rz_pre = (jnp.dot(h2b, w_rzx_ref[...], preferred_element_type=f32)
              + jnp.dot(h0b, w_rzh_ref[...], preferred_element_type=f32)
              + b_rz_ref[...])
    rz = jax.nn.sigmoid(rz_pre)                          # (TB, 2*Hp) f32
    r = rz[:, :hp]                                       # 128-aligned slices -> free
    z = rz[:, hp:]
    # n gate needs i_n and h_n separately (n = tanh(i_n + r*h_n)).
    i_n = jnp.dot(h2b, w_in_ref[...], preferred_element_type=f32) + b_in_ref[...]
    h_n = jnp.dot(h0b, w_hn_ref[...], preferred_element_type=f32) + b_hn_ref[...]
    n = jnp.tanh(i_n + r * h_n)
    h_new = n + z * (h0 - n)                             # == (1-z)*n + z*h0, fewer VPU ops
    h_out_ref[...] = h_new

    # ---- grouped softmax over num_classes (per latent dim), lane-dense epilogue ----
    # Only the per-group max uses the (TB, groups, num_classes) view; exp stays on the
    # lane-dense (TB, Hp) layout, the per-group sum (broadcast back to all lanes) is a
    # single f32 matmul with a block-diagonal ones matrix on the MXU, and the divide
    # is an EUP reciprocal.  Padded groups are all-zero -> uniform probs, sliced away.
    tb = h_new.shape[0]
    m3 = jnp.max(h_new.reshape(tb, groups, num_classes), axis=-1, keepdims=True)
    m_b = jnp.broadcast_to(m3, (tb, groups, num_classes)).reshape(tb, hp)
    e = jnp.exp(h_new - m_b)                             # (TB, Hp) f32, lane-dense
    s_b = jnp.dot(e, ones_ref[...], preferred_element_type=f32)   # per-group sum, bcast
    p_out_ref[...] = e * pl.reciprocal(s_b, approx=True)


# ----------------------------------------------------------------------------
# Wrapper
# ----------------------------------------------------------------------------
def rnn_transition_forward(x, a, logits, kparams, *, latent_dim, num_classes):
    """Mirrors RNNTransitionCategorical.forward(x, a, logits)."""
    f32, bf16 = jnp.float32, jnp.bfloat16
    H = latent_dim * num_classes
    x2 = x.reshape(-1, H).astype(bf16)                   # bf16 activations: half the DMA
    a2 = a.reshape(-1, a.shape[-1]).astype(bf16)
    h0 = logits.reshape(-1, H).astype(f32)               # recurrent state stays f32
    B = x2.shape[0]

    # Padded dims are implied by the prepared weight shapes.
    Xp = kparams["w1x"].shape[0]
    Ap = kparams["w1a"].shape[0]
    L1p = kparams["w2"].shape[0]
    L2p = kparams["w2"].shape[1]
    Hp = kparams["w_hn"].shape[0]
    groups = Hp // num_classes

    # Batch tiling: >=2 grid steps whenever B permits so the "parallel" batch axis can
    # shard across v7x's two TensorCores; TB multiple of 8, capped at 512 to amortize
    # the per-grid-step overhead on v5e/v6e while staying well inside VMEM.
    TB = max(8, min(512, _round_up(pl.cdiv(B, 2), 8)))
    Bp = _round_up(B, TB)

    def pad2(v, rows, cols):
        return jnp.pad(v, ((0, rows - v.shape[0]), (0, cols - v.shape[1])))

    x_p = pad2(x2, Bp, Xp)
    a_p = pad2(a2, Bp, Ap)
    h0_p = pad2(h0, Bp, Hp)   # zero re-padding every call keeps padded hidden lanes at 0

    weights = (kparams["w1x"], kparams["w1a"], kparams["b1"],
               kparams["w2"], kparams["b2"],
               kparams["w_rzx"], kparams["w_rzh"], kparams["b_rz"],
               kparams["w_in"], kparams["b_in"],
               kparams["w_hn"], kparams["b_hn"],
               kparams["ones_blk"])

    def batch_spec(width):
        return pl.BlockSpec((TB, width), lambda i: (i, 0))

    def const_spec(w):
        # Resident weights: constant block index (DMA'd once) and single-buffered —
        # double-buffering data that never changes only wastes VMEM (v7x: 64 MiB/TC).
        return pl.BlockSpec(w.shape, lambda i: (0, 0),
                            pipeline_mode=pl.Buffered(buffer_count=1))

    # VMEM budget computed from the actual footprint (weights single-buffered,
    # activation tiles double-buffered, plus live f32 intermediates), capped at 56 MiB
    # to stay under v7x's 64 MiB per-TensorCore (v5e/v6e could go up to ~100 MiB).
    weight_bytes = sum(math.prod(w.shape) * w.dtype.itemsize for w in weights)
    act_bytes = 2 * TB * (2 * Xp + 2 * Ap + 4 * Hp + 2 * 4 * Hp)
    inter_bytes = TB * (L1p + L2p + 6 * Hp) * 4
    vmem_limit = int(min(56 * 2 ** 20,
                         max(16 * 2 ** 20,
                             1.25 * (weight_bytes + act_bytes + inter_bytes))))

    flops = 2 * Bp * (Xp * L1p + Ap * L1p + L1p * L2p
                      + (L2p + Hp) * 2 * Hp + L2p * Hp + Hp * Hp   # GRU matmuls
                      + Hp * Hp)                                   # softmax group-sum matmul
    transcendentals = Bp * 5 * Hp            # sigmoid(2H) + tanh(H) + exp(H) + recip(H)
    bytes_accessed = weight_bytes + Bp * (2 * Xp + 2 * Ap + 3 * 4 * Hp)

    kernel = functools.partial(_rnn_transition_kernel, groups, num_classes)

    h_full, p_full = pl.pallas_call(
        kernel,
        out_shape=(jax.ShapeDtypeStruct((Bp, Hp), f32),
                   jax.ShapeDtypeStruct((Bp, Hp), f32)),
        grid=(Bp // TB,),
        in_specs=[batch_spec(Xp), batch_spec(Ap), batch_spec(Hp)]
                 + [const_spec(w) for w in weights],
        out_specs=(pl.BlockSpec((TB, Hp), lambda i: (i, 0)),
                   pl.BlockSpec((TB, Hp), lambda i: (i, 0))),
        input_output_aliases={2: 0},   # reuse the h0 buffer for the new hidden state
        compiler_params=pltpu.CompilerParams(
            dimension_semantics=("parallel",),           # shard batch across TCs (v7x)
            vmem_limit_bytes=vmem_limit),
        cost_estimate=pl.CostEstimate(flops=flops,
                                      transcendentals=transcendentals,
                                      bytes_accessed=bytes_accessed),
    )(x_p, a_p, h0_p, *weights)

    h = h_full[:B, :H]
    p = p_full[:B, :H]
    logits_out = h.reshape(-1, latent_dim, num_classes)
    p_x = p.reshape(-1, latent_dim, num_classes)
    return (logits_out, p_x), h


# ----------------------------------------------------------------------------
# Parameter construction
# ----------------------------------------------------------------------------
def _build_kernel_params(raw, *, latent_dim, num_classes, action_dim, layers):
    """Pad / fuse the raw (torch-layout, (in,out)) params for the kernel."""
    H = latent_dim * num_classes
    L1, L2 = layers
    f32, bf16 = jnp.float32, jnp.bfloat16

    Xp = _round_up(H, 128)
    Ap = _round_up(action_dim, 128)
    L1p = _round_up(L1, 128)
    L2p = _round_up(L2, 128)
    Hp = _round_up(H, _lcm(128, num_classes))            # lane-aligned AND class-divisible

    def pad2(w, rows, cols):
        return jnp.zeros((rows, cols), f32).at[:w.shape[0], :w.shape[1]].set(w)

    w1, b1 = raw["w1"], raw["b1"]
    w2, b2 = raw["w2"], raw["b2"]
    w_ih, w_hh, b_ih, b_hh = raw["w_ih"], raw["w_hh"], raw["b_ih"], raw["b_hh"]

    # Dense layer 1 split into x / a parts (removes the wrapper-side concat).
    w1x = pad2(w1[:H, :], Xp, L1p).astype(bf16)
    w1a = pad2(w1[H:, :], Ap, L1p).astype(bf16)
    b1p = pad2(b1.reshape(1, -1), 1, L1p)
    w2p = pad2(w2, L1p, L2p).astype(bf16)
    b2p = pad2(b2.reshape(1, -1), 1, L2p)

    # GRU weights, PyTorch gate order r, z, n (stored as (in, 3H)).
    w_ih_r, w_ih_z, w_ih_n = w_ih[:, :H], w_ih[:, H:2 * H], w_ih[:, 2 * H:]
    w_hh_r, w_hh_z, w_hh_n = w_hh[:, :H], w_hh[:, H:2 * H], w_hh[:, 2 * H:]
    b_ih_r, b_ih_z, b_ih_n = b_ih[:H], b_ih[H:2 * H], b_ih[2 * H:]
    b_hh_r, b_hh_z, b_hh_n = b_hh[:H], b_hh[H:2 * H], b_hh[2 * H:]

    # r/z gates as two split matmuls (input part acts on h2, hidden part on h0);
    # columns [0:Hp) = r, [Hp:2Hp) = z; biases folded together.
    w_rzx = (jnp.zeros((L2p, 2 * Hp), f32)
             .at[:L2, :H].set(w_ih_r).at[:L2, Hp:Hp + H].set(w_ih_z)).astype(bf16)
    w_rzh = (jnp.zeros((Hp, 2 * Hp), f32)
             .at[:H, :H].set(w_hh_r).at[:H, Hp:Hp + H].set(w_hh_z)).astype(bf16)
    b_rz = (jnp.zeros((1, 2 * Hp), f32)
            .at[0, :H].set(b_ih_r + b_hh_r)
            .at[0, Hp:Hp + H].set(b_ih_z + b_hh_z))

    w_in = pad2(w_ih_n, L2p, Hp).astype(bf16)
    b_in = pad2(b_ih_n.reshape(1, -1), 1, Hp)
    w_hn = pad2(w_hh_n, Hp, Hp).astype(bf16)
    b_hn = pad2(b_hh_n.reshape(1, -1), 1, Hp)

    # Block-diagonal ones (Hp, Hp) f32: one MXU matmul gives the per-group sum of
    # exp(...) already broadcast back to every lane in the group (keeps the grouped
    # softmax lane-dense); f32 keeps the normalization exact.
    g_idx = jnp.arange(Hp) // num_classes
    ones_blk = (g_idx[:, None] == g_idx[None, :]).astype(f32)

    return dict(w1x=w1x, w1a=w1a, b1=b1p, w2=w2p, b2=b2p,
                w_rzx=w_rzx, w_rzh=w_rzh, b_rz=b_rz,
                w_in=w_in, b_in=b_in, w_hn=w_hn, b_hn=b_hn,
                ones_blk=ones_blk)


def init_params(key, *, latent_dim, num_classes, action_dim, layers):
    """PyTorch-style uniform init; returns (raw f32 params, padded kernel params)."""
    assert len(layers) == 2, "kernel fuses exactly two Dense layers"
    H = latent_dim * num_classes
    input_size = H + action_dim
    L1, L2 = layers
    keys = jax.random.split(key, 8)

    def unif(k, shape, fan_in):
        bound = 1.0 / jnp.sqrt(jnp.float32(fan_in))
        return jax.random.uniform(k, shape, jnp.float32, -bound, bound)

    raw = {
        "w1": unif(keys[0], (input_size, L1), input_size),
        "b1": unif(keys[1], (L1,), input_size),
        "w2": unif(keys[2], (L1, L2), L1),
        "b2": unif(keys[3], (L2,), L1),
        # GRUCell: (in, 3H) / (H, 3H); gate order r, z, n; bound 1/sqrt(H).
        "w_ih": unif(keys[4], (L2, 3 * H), H),
        "w_hh": unif(keys[5], (H, 3 * H), H),
        "b_ih": unif(keys[6], (3 * H,), H),
        "b_hh": unif(keys[7], (3 * H,), H),
    }
    kparams = _build_kernel_params(raw, latent_dim=latent_dim, num_classes=num_classes,
                                   action_dim=action_dim, layers=layers)
    return raw, kparams


# ----------------------------------------------------------------------------
# Pure-JAX reference (mirrors PyTorch semantics; bf16 matmuls like the kernel)
# ----------------------------------------------------------------------------
def _reference_forward(x, a, logits, raw, *, latent_dim, num_classes):
    H = latent_dim * num_classes
    bf16 = jnp.bfloat16

    def mm(u, w):
        return jnp.dot(u.astype(bf16), w.astype(bf16), preferred_element_type=jnp.float32)

    x2 = x.reshape(-1, H).astype(jnp.float32)
    a2 = a.reshape(-1, a.shape[-1]).astype(jnp.float32)
    h0 = logits.reshape(-1, H).astype(jnp.float32)
    xa = jnp.concatenate([x2, a2], axis=-1)
    h1 = jax.nn.relu(mm(xa, raw["w1"]) + raw["b1"])
    h2 = jax.nn.relu(mm(h1, raw["w2"]) + raw["b2"])
    gi = mm(h2, raw["w_ih"]) + raw["b_ih"]
    gh = mm(h0, raw["w_hh"]) + raw["b_hh"]
    r = jax.nn.sigmoid(gi[:, :H] + gh[:, :H])
    z = jax.nn.sigmoid(gi[:, H:2 * H] + gh[:, H:2 * H])
    n = jnp.tanh(gi[:, 2 * H:] + r * gh[:, 2 * H:])
    h = (1.0 - z) * n + z * h0
    logits3 = h.reshape(-1, latent_dim, num_classes)
    p_x = jax.nn.softmax(logits3, axis=-1)
    return (logits3, p_x), h


# ----------------------------------------------------------------------------
if __name__ == "__main__":
    latent_dim = 4
    num_classes = 8
    action_dim = 4
    layers = [32, 32]
    batch = 2
    hidden_dim = latent_dim * num_classes

    key = jax.random.PRNGKey(0)
    k_params, kx, ka, kl = jax.random.split(key, 4)

    raw, kparams = init_params(k_params, latent_dim=latent_dim, num_classes=num_classes,
                               action_dim=action_dim, layers=layers)

    x = jax.random.normal(kx, (batch, latent_dim, num_classes), jnp.float32)
    a = jax.random.normal(ka, (batch, action_dim), jnp.float32)
    logits = jax.random.normal(kl, (batch, latent_dim, num_classes), jnp.float32)

    fwd = jax.jit(functools.partial(rnn_transition_forward,
                                    latent_dim=latent_dim, num_classes=num_classes))
    (logits_out, p_x), h = fwd(x, a, logits, kparams)
    jax.block_until_ready((logits_out, p_x, h))

    # Silent correctness check against the pure-JAX reference.
    (ref_logits, ref_px), ref_h = _reference_forward(
        x, a, logits, raw, latent_dim=latent_dim, num_classes=num_classes)
    assert logits_out.shape == (batch, latent_dim, num_classes)
    assert p_x.shape == (batch, latent_dim, num_classes)
    assert h.shape == (batch, hidden_dim)
    assert jnp.allclose(logits_out, ref_logits, atol=2e-3, rtol=2e-3)
    assert jnp.allclose(p_x, ref_px, atol=2e-3, rtol=2e-3)
    assert jnp.allclose(h, ref_h, atol=2e-3, rtol=2e-3)
    assert bool(jnp.all(jnp.isfinite(p_x)))

    print("KERNEL_OK")
</pallas_src>

<mosaic_0001>
module attributes {stable_mosaic.version = 11 : i64} {
  func.func @_rnn_transition_kernel(%arg0: i32, %arg1: memref<8x128xbf16, #tpu.memory_space<vmem>>, %arg2: memref<8x128xbf16, #tpu.memory_space<vmem>>, %arg3: memref<8x128xf32, #tpu.memory_space<vmem>>, %arg4: memref<128x128xbf16, #tpu.memory_space<vmem>>, %arg5: memref<128x128xbf16, #tpu.memory_space<vmem>>, %arg6: memref<1x128xf32, #tpu.memory_space<vmem>>, %arg7: memref<128x128xbf16, #tpu.memory_space<vmem>>, %arg8: memref<1x128xf32, #tpu.memory_space<vmem>>, %arg9: memref<128x256xbf16, #tpu.memory_space<vmem>>, %arg10: memref<128x256xbf16, #tpu.memory_space<vmem>>, %arg11: memref<1x256xf32, #tpu.memory_space<vmem>>, %arg12: memref<128x128xbf16, #tpu.memory_space<vmem>>, %arg13: memref<1x128xf32, #tpu.memory_space<vmem>>, %arg14: memref<128x128xbf16, #tpu.memory_space<vmem>>, %arg15: memref<1x128xf32, #tpu.memory_space<vmem>>, %arg16: memref<128x128xf32, #tpu.memory_space<vmem>>, %arg17: memref<8x128xf32, #tpu.memory_space<vmem>>, %arg18: memref<8x128xf32, #tpu.memory_space<vmem>>) attributes {dimension_semantics = [#tpu.dimension_semantics<parallel>], iteration_bounds = array<i64: 1>, scalar_prefetch = 0 : i64, scratch_operands = 0 : i64, tpu.core_type = #tpu.core_type<tc>, window_params = [{transform_indices = @transform_0, window_bounds = array<i64: 8, 128>}, {transform_indices = @transform_1, window_bounds = array<i64: 8, 128>}, {transform_indices = @transform_2, window_bounds = array<i64: 8, 128>}, {pipeline_mode = #tpu.pipeline_mode<synchronous>, transform_indices = @transform_3, window_bounds = array<i64: 128, 128>}, {pipeline_mode = #tpu.pipeline_mode<synchronous>, transform_indices = @transform_4, window_bounds = array<i64: 128, 128>}, {pipeline_mode = #tpu.pipeline_mode<synchronous>, transform_indices = @transform_5, window_bounds = array<i64: 1, 128>}, {pipeline_mode = #tpu.pipeline_mode<synchronous>, transform_indices = @transform_6, window_bounds = array<i64: 128, 128>}, {pipeline_mode = #tpu.pipeline_mode<synchronous>, transform_indices = @transform_7, window_bounds = array<i64: 1, 128>}, {pipeline_mode = #tpu.pipeline_mode<synchronous>, transform_indices = @transform_8, window_bounds = array<i64: 128, 256>}, {pipeline_mode = #tpu.pipeline_mode<synchronous>, transform_indices = @transform_9, window_bounds = array<i64: 128, 256>}, {pipeline_mode = #tpu.pipeline_mode<synchronous>, transform_indices = @transform_10, window_bounds = array<i64: 1, 256>}, {pipeline_mode = #tpu.pipeline_mode<synchronous>, transform_indices = @transform_11, window_bounds = array<i64: 128, 128>}, {pipeline_mode = #tpu.pipeline_mode<synchronous>, transform_indices = @transform_12, window_bounds = array<i64: 1, 128>}, {pipeline_mode = #tpu.pipeline_mode<synchronous>, transform_indices = @transform_13, window_bounds = array<i64: 128, 128>}, {pipeline_mode = #tpu.pipeline_mode<synchronous>, transform_indices = @transform_14, window_bounds = array<i64: 1, 128>}, {pipeline_mode = #tpu.pipeline_mode<synchronous>, transform_indices = @transform_15, window_bounds = array<i64: 128, 128>}, {transform_indices = @transform_16, window_bounds = array<i64: 8, 128>}, {transform_indices = @transform_17, window_bounds = array<i64: 8, 128>}]} {
    %c0 = arith.constant 0 : index
    %c0_0 = arith.constant 0 : index
    %0 = vector.load %arg3[%c0, %c0_0] : memref<8x128xf32, #tpu.memory_space<vmem>>, vector<8x128xf32>
    %1 = arith.truncf %0 : vector<8x128xf32> to vector<8x128xbf16>
    %c0_1 = arith.constant 0 : index
    %c0_2 = arith.constant 0 : index
    %2 = vector.load %arg1[%c0_1, %c0_2] : memref<8x128xbf16, #tpu.memory_space<vmem>>, vector<8x128xbf16>
    %c0_3 = arith.constant 0 : index
    %c0_4 = arith.constant 0 : index
    %3 = vector.load %arg4[%c0_3, %c0_4] : memref<128x128xbf16, #tpu.memory_space<vmem>>, vector<128x128xbf16>
    %cst = arith.constant dense<0.000000e+00> : vector<8x128xf32>
    %4 = tpu.matmul %2, %3, %cst {dimension_numbers = #tpu.dot_dimension_numbers<[1], [0], [0], [1], [0, 0, 1, 1], [], []>} : vector<8x128xbf16>, vector<128x128xbf16>, vector<8x128xf32> -> vector<8x128xf32>
    %c0_5 = arith.constant 0 : index
    %c0_6 = arith.constant 0 : index
    %5 = vector.load %arg2[%c0_5, %c0_6] : memref<8x128xbf16, #tpu.memory_space<vmem>>, vector<8x128xbf16>
    %c0_7 = arith.constant 0 : index
    %c0_8 = arith.constant 0 : index
    %6 = vector.load %arg5[%c0_7, %c0_8] : memref<128x128xbf16, #tpu.memory_space<vmem>>, vector<128x128xbf16>
    %cst_9 = arith.constant dense<0.000000e+00> : vector<8x128xf32>
    %7 = tpu.matmul %5, %6, %cst_9 {dimension_numbers = #tpu.dot_dimension_numbers<[1], [0], [0], [1], [0, 0, 1, 1], [], []>} : vector<8x128xbf16>, vector<128x128xbf16>, vector<8x128xf32> -> vector<8x128xf32>
    %8 = arith.addf %4, %7 : vector<8x128xf32>
    %c0_10 = arith.constant 0 : index
    %c0_11 = arith.constant 0 : index
    %9 = vector.load %arg6[%c0_10, %c0_11] : memref<1x128xf32, #tpu.memory_space<vmem>>, vector<1x128xf32>
    %10 = vector.broadcast %9 : vector<1x128xf32> to vector<8x128xf32>
    %11 = arith.addf %8, %10 : vector<8x128xf32>
    %cst_12 = arith.constant 0.000000e+00 : f32
    %12 = vector.broadcast %cst_12 : f32 to vector<8x128xf32>
    %13 = arith.maximumf %11, %12 : vector<8x128xf32>
    %14 = arith.truncf %13 : vector<8x128xf32> to vector<8x128xbf16>
    %c0_13 = arith.constant 0 : index
    %c0_14 = arith.constant 0 : index
    %15 = vector.load %arg7[%c0_13, %c0_14] : memref<128x128xbf16, #tpu.memory_space<vmem>>, vector<128x128xbf16>
    %cst_15 = arith.constant dense<0.000000e+00> : vector<8x128xf32>
    %16 = tpu.matmul %14, %15, %cst_15 {dimension_numbers = #tpu.dot_dimension_numbers<[1], [0], [0], [1], [0, 0, 1, 1], [], []>} : vector<8x128xbf16>, vector<128x128xbf16>, vector<8x128xf32> -> vector<8x128xf32>
    %c0_16 = arith.constant 0 : index
    %c0_17 = arith.constant 0 : index
    %17 = vector.load %arg8[%c0_16, %c0_17] : memref<1x128xf32, #tpu.memory_space<vmem>>, vector<1x128xf32>
    %18 = vector.broadcast %17 : vector<1x128xf32> to vector<8x128xf32>
    %19 = arith.addf %16, %18 : vector<8x128xf32>
    %cst_18 = arith.constant 0.000000e+00 : f32
    %20 = vector.broadcast %cst_18 : f32 to vector<8x128xf32>
    %21 = arith.maximumf %19, %20 : vector<8x128xf32>
    %22 = arith.truncf %21 : vector<8x128xf32> to vector<8x128xbf16>
    %c0_19 = arith.constant 0 : index
    %c0_20 = arith.constant 0 : index
    %23 = vector.load %arg9[%c0_19, %c0_20] : memref<128x256xbf16, #tpu.memory_space<vmem>>, vector<128x256xbf16>
    %cst_21 = arith.constant dense<0.000000e+00> : vector<8x256xf32>
    %24 = tpu.matmul %22, %23, %cst_21 {dimension_numbers = #tpu.dot_dimension_numbers<[1], [0], [0], [1], [0, 0, 1, 1], [], []>} : vector<8x128xbf16>, vector<128x256xbf16>, vector<8x256xf32> -> vector<8x256xf32>
    %c0_22 = arith.constant 0 : index
    %c0_23 = arith.constant 0 : index
    %25 = vector.load %arg10[%c0_22, %c0_23] : memref<128x256xbf16, #tpu.memory_space<vmem>>, vector<128x256xbf16>
    %cst_24 = arith.constant dense<0.000000e+00> : vector<8x256xf32>
    %26 = tpu.matmul %1, %25, %cst_24 {dimension_numbers = #tpu.dot_dimension_numbers<[1], [0], [0], [1], [0, 0, 1, 1], [], []>} : vector<8x128xbf16>, vector<128x256xbf16>, vector<8x256xf32> -> vector<8x256xf32>
    %27 = arith.addf %24, %26 : vector<8x256xf32>
    %c0_25 = arith.constant 0 : index
    %c0_26 = arith.constant 0 : index
    %28 = vector.load %arg11[%c0_25, %c0_26] : memref<1x256xf32, #tpu.memory_space<vmem>>, vector<1x256xf32>
    %29 = vector.broadcast %28 : vector<1x256xf32> to vector<8x256xf32>
    %30 = arith.addf %27, %29 : vector<8x256xf32>
    %31 = arith.negf %30 : vector<8x256xf32>
    %32 = math.exp %31 : vector<8x256xf32>
    %cst_27 = arith.constant 1.000000e+00 : f32
    %33 = vector.broadcast %cst_27 : f32 to vector<8x256xf32>
    %34 = arith.addf %33, %32 : vector<8x256xf32>
    %35 = arith.divf %33, %34 : vector<8x256xf32>
    %36 = vector.extract_strided_slice %35 {offsets = [0, 0], sizes = [8, 128], strides = [1, 1]} : vector<8x256xf32> to vector<8x128xf32>
    %37 = vector.extract_strided_slice %35 {offsets = [0, 128], sizes = [8, 128], strides = [1, 1]} : vector<8x256xf32> to vector<8x128xf32>
    %c0_28 = arith.constant 0 : index
    %c0_29 = arith.constant 0 : index
    %38 = vector.load %arg12[%c0_28, %c0_29] : memref<128x128xbf16, #tpu.memory_space<vmem>>, vector<128x128xbf16>
    %cst_30 = arith.constant dense<0.000000e+00> : vector<8x128xf32>
    %39 = tpu.matmul %22, %38, %cst_30 {dimension_numbers = #tpu.dot_dimension_numbers<[1], [0], [0], [1], [0, 0, 1, 1], [], []>} : vector<8x128xbf16>, vector<128x128xbf16>, vector<8x128xf32> -> vector<8x128xf32>
    %c0_31 = arith.constant 0 : index
    %c0_32 = arith.constant 0 : index
    %40 = vector.load %arg13[%c0_31, %c0_32] : memref<1x128xf32, #tpu.memory_space<vmem>>, vector<1x128xf32>
    %41 = vector.broadcast %40 : vector<1x128xf32> to vector<8x128xf32>
    %42 = arith.addf %39, %41 : vector<8x128xf32>
    %c0_33 = arith.constant 0 : index
    %c0_34 = arith.constant 0 : index
    %43 = vector.load %arg14[%c0_33, %c0_34] : memref<128x128xbf16, #tpu.memory_space<vmem>>, vector<128x128xbf16>
    %cst_35 = arith.constant dense<0.000000e+00> : vector<8x128xf32>
    %44 = tpu.matmul %1, %43, %cst_35 {dimension_numbers = #tpu.dot_dimension_numbers<[1], [0], [0], [1], [0, 0, 1, 1], [], []>} : vector<8x128xbf16>, vector<128x128xbf16>, vector<8x128xf32> -> vector<8x128xf32>
    %c0_36 = arith.constant 0 : index
    %c0_37 = arith.constant 0 : index
    %45 = vector.load %arg15[%c0_36, %c0_37] : memref<1x128xf32, #tpu.memory_space<vmem>>, vector<1x128xf32>
    %46 = vector.broadcast %45 : vector<1x128xf32> to vector<8x128xf32>
    %47 = arith.addf %44, %46 : vector<8x128xf32>
    %48 = arith.mulf %36, %47 : vector<8x128xf32>
    %49 = arith.addf %42, %48 : vector<8x128xf32>
    %50 = math.tanh %49 : vector<8x128xf32>
    %51 = arith.subf %0, %50 : vector<8x128xf32>
    %52 = arith.mulf %37, %51 : vector<8x128xf32>
    %53 = arith.addf %50, %52 : vector<8x128xf32>
    %c0_38 = arith.constant 0 : index
    %c0_39 = arith.constant 0 : index
    %54 = vector.load %arg17[%c0_38, %c0_39] : memref<8x128xf32, #tpu.memory_space<vmem>>, vector<8x128xf32>
    tpu.vector_store %arg17[%c0_38, %c0_39], %53 {strides = array<i32>} : memref<8x128xf32, #tpu.memory_space<vmem>>, vector<8x128xf32>,
    %55 = vector.shape_cast %53 : vector<8x128xf32> to vector<8x16x8xf32>
    %cst_40 = arith.constant dense<0xFF800000> : vector<8x16xf32>
    %56 = vector.multi_reduction <maximumf>, %55, %cst_40 [2] : vector<8x16x8xf32> to vector<8x16xf32>
    %57 = vector.shape_cast %56 : vector<8x16xf32> to vector<8x16x1xf32>
    %58 = vector.shape_cast %57 : vector<8x16x1xf32> to vector<8x16x1xf32>
    %59 = vector.broadcast %58 : vector<8x16x1xf32> to vector<8x16x8xf32>
    %60 = vector.shape_cast %59 : vector<8x16x8xf32> to vector<8x128xf32>
    %61 = arith.subf %53, %60 : vector<8x128xf32>
    %62 = math.exp %61 : vector<8x128xf32>
    %c0_41 = arith.constant 0 : index
    %c0_42 = arith.constant 0 : index
    %63 = vector.load %arg16[%c0_41, %c0_42] : memref<128x128xf32, #tpu.memory_space<vmem>>, vector<128x128xf32>
    %cst_43 = arith.constant dense<0.000000e+00> : vector<8x128xf32>
    %64 = tpu.matmul %62, %63, %cst_43 {dimension_numbers = #tpu.dot_dimension_numbers<[1], [0], [0], [1], [0, 0, 1, 1], [], []>} : vector<8x128xf32>, vector<128x128xf32>, vector<8x128xf32> -> vector<8x128xf32>
    %65 = tpu.reciprocal %64 {approx = true} : vector<8x128xf32> -> vector<8x128xf32>
    %66 = arith.mulf %62, %65 : vector<8x128xf32>
    %c0_44 = arith.constant 0 : index
    %c0_45 = arith.constant 0 : index
    %67 = vector.load %arg18[%c0_44, %c0_45] : memref<8x128xf32, #tpu.memory_space<vmem>>, vector<8x128xf32>
    tpu.vector_store %arg18[%c0_44, %c0_45], %66 {strides = array<i32>} : memref<8x128xf32, #tpu.memory_space<vmem>>, vector<8x128xf32>,
    return
  }
  func.func @transform_0(%arg0: i32) -> (i32, i32) {
    %c0_i32 = arith.constant 0 : i32
    %c0_i32_0 = arith.constant 0 : i32
    return %arg0, %c0_i32 : i32, i32
  }
  func.func @transform_1(%arg0: i32) -> (i32, i32) {
    %c0_i32 = arith.constant 0 : i32
    %c0_i32_0 = arith.constant 0 : i32
    return %arg0, %c0_i32 : i32, i32
  }
  func.func @transform_2(%arg0: i32) -> (i32, i32) {
    %c0_i32 = arith.constant 0 : i32
    %c0_i32_0 = arith.constant 0 : i32
    return %arg0, %c0_i32 : i32, i32
  }
  func.func @transform_3(%arg0: i32) -> (i32, i32) {
    %c0_i32 = arith.constant 0 : i32
    %c0_i32_0 = arith.constant 0 : i32
    %c0_i32_1 = arith.constant 0 : i32
    return %c0_i32, %c0_i32_0 : i32, i32
  }
  func.func @transform_4(%arg0: i32) -> (i32, i32) {
    %c0_i32 = arith.constant 0 : i32
    %c0_i32_0 = arith.constant 0 : i32
    %c0_i32_1 = arith.constant 0 : i32
    return %c0_i32, %c0_i32_0 : i32, i32
  }
  func.func @transform_5(%arg0: i32) -> (i32, i32) {
    %c0_i32 = arith.constant 0 : i32
    %c0_i32_0 = arith.constant 0 : i32
    %c0_i32_1 = arith.constant 0 : i32
    return %c0_i32, %c0_i32_0 : i32, i32
  }
  func.func @transform_6(%arg0: i32) -> (i32, i32) {
    %c0_i32 = arith.constant 0 : i32
    %c0_i32_0 = arith.constant 0 : i32
    %c0_i32_1 = arith.constant 0 : i32
    return %c0_i32, %c0_i32_0 : i32, i32
  }
  func.func @transform_7(%arg0: i32) -> (i32, i32) {
    %c0_i32 = arith.constant 0 : i32
    %c0_i32_0 = arith.constant 0 : i32
    %c0_i32_1 = arith.constant 0 : i32
    return %c0_i32, %c0_i32_0 : i32, i32
  }
  func.func @transform_8(%arg0: i32) -> (i32, i32) {
    %c0_i32 = arith.constant 0 : i32
    %c0_i32_0 = arith.constant 0 : i32
    %c0_i32_1 = arith.constant 0 : i32
    return %c0_i32, %c0_i32_0 : i32, i32
  }
  func.func @transform_9(%arg0: i32) -> (i32, i32) {
    %c0_i32 = arith.constant 0 : i32
    %c0_i32_0 = arith.constant 0 : i32
    %c0_i32_1 = arith.constant 0 : i32
    return %c0_i32, %c0_i32_0 : i32, i32
  }
  func.func @transform_10(%arg0: i32) -> (i32, i32) {
    %c0_i32 = arith.constant 0 : i32
    %c0_i32_0 = arith.constant 0 : i32
    %c0_i32_1 = arith.constant 0 : i32
    return %c0_i32, %c0_i32_0 : i32, i32
  }
  func.func @transform_11(%arg0: i32) -> (i32, i32) {
    %c0_i32 = arith.constant 0 : i32
    %c0_i32_0 = arith.constant 0 : i32
    %c0_i32_1 = arith.constant 0 : i32
    return %c0_i32, %c0_i32_0 : i32, i32
  }
  func.func @transform_12(%arg0: i32) -> (i32, i32) {
    %c0_i32 = arith.constant 0 : i32
    %c0_i32_0 = arith.constant 0 : i32
    %c0_i32_1 = arith.constant 0 : i32
    return %c0_i32, %c0_i32_0 : i32, i32
  }
  func.func @transform_13(%arg0: i32) -> (i32, i32) {
    %c0_i32 = arith.constant 0 : i32
    %c0_i32_0 = arith.constant 0 : i32
    %c0_i32_1 = arith.constant 0 : i32
    return %c0_i32, %c0_i32_0 : i32, i32
  }
  func.func @transform_14(%arg0: i32) -> (i32, i32) {
    %c0_i32 = arith.constant 0 : i32
    %c0_i32_0 = arith.constant 0 : i32
    %c0_i32_1 = arith.constant 0 : i32
    return %c0_i32, %c0_i32_0 : i32, i32
  }
  func.func @transform_15(%arg0: i32) -> (i32, i32) {
    %c0_i32 = arith.constant 0 : i32
    %c0_i32_0 = arith.constant 0 : i32
    %c0_i32_1 = arith.constant 0 : i32
    return %c0_i32, %c0_i32_0 : i32, i32
  }
  func.func @transform_16(%arg0: i32) -> (i32, i32) {
    %c0_i32 = arith.constant 0 : i32
    %c0_i32_0 = arith.constant 0 : i32
    return %arg0, %c0_i32 : i32, i32
  }
  func.func @transform_17(%arg0: i32) -> (i32, i32) {
    %c0_i32 = arith.constant 0 : i32
    %c0_i32_0 = arith.constant 0 : i32
    return %arg0, %c0_i32 : i32, i32
  }
}

</mosaic_0001>

<llo_original>
// kernel: rnn_transition_forward.1
$region0: #{rnn_transition_forward.1}
  #allocation0 [shape = 'u32[]', space=smem, size = 0x4, offset = 0x4, fixed_abs, tag = 'smem constant byte address 0x4 - core index']
  #allocation1 [shape = 'u32[144,128]{1,0:T(1,128)}', space=vmem, size = 0x12000, scoped, tag = 'internal scratch']
  %s0 = inlined_call_operand.vmem [shape: bf16[8,128], index: 0, kind: input, shape index: {}]
  %s1 = inlined_call_operand.vmem [shape: bf16[8,128], index: 1, kind: input, shape index: {}]
  %s2 = inlined_call_operand.vmem [shape: f32[8,128], index: 2, kind: input, shape index: {}, may-alias: {2,16}]
  %s3 = inlined_call_operand.vmem [shape: bf16[128,128], index: 3, kind: input, shape index: {}]
  %s4 = inlined_call_operand.hbm [shape: bf16[128,128], index: 4, kind: input, shape index: {}]
  %s5 = inlined_call_operand.vmem [shape: f32[1,128], index: 5, kind: input, shape index: {}]
  %s6 = inlined_call_operand.hbm [shape: bf16[128,128], index: 6, kind: input, shape index: {}]
  %s7 = inlined_call_operand.vmem [shape: f32[1,128], index: 7, kind: input, shape index: {}]
  %s8 = inlined_call_operand.hbm [shape: bf16[128,256], index: 8, kind: input, shape index: {}]
  %s9 = inlined_call_operand.hbm [shape: bf16[128,256], index: 9, kind: input, shape index: {}]
  %s10 = inlined_call_operand.vmem [shape: f32[1,256], index: 10, kind: input, shape index: {}]
  %s11 = inlined_call_operand.hbm [shape: bf16[128,128], index: 11, kind: input, shape index: {}]
  %s12 = inlined_call_operand.vmem [shape: f32[1,128], index: 12, kind: input, shape index: {}]
  %s13 = inlined_call_operand.hbm [shape: bf16[128,128], index: 13, kind: input, shape index: {}]
  %s14 = inlined_call_operand.vmem [shape: f32[1,128], index: 14, kind: input, shape index: {}]
  %s15 = inlined_call_operand.hbm [shape: f32[128,128], index: 15, kind: input, shape index: {}]
  %s16 = inlined_call_operand.vmem [shape: f32[8,128], index: 16, kind: output, shape index: {0}, may-alias: {2,16}]
  %s17 = inlined_call_operand.vmem [shape: f32[8,128], index: 17, kind: output, shape index: {1}]
  %18 = xla_tuple %s16, %s17
  %s19 = sld [smem:[#allocation0]]
  $region110: #{rnn_transition_forward.1} parent=0
    _
  %s21 = ssub.s32 1, %s19
  %s22 = scalar_select 0, %s21, %s19
  $region1: #{rnn_transition_forward.1} parent=0
    #allocation2 [shape = 'u8[32768]{0}', space=vmem, size = 0x8000, scoped, tag = 'input window, operand 4, single buffered']
    #allocation3 [shape = 's32[1]{0}', space=sflag, size = 0x4, scoped, tag = 'scoped memory for rnn_transition_forward.1']
    #allocation4 [shape = 'u8[32768]{0}', space=vmem, size = 0x8000, scoped, tag = 'input window, operand 6, single buffered']
    #allocation5 [shape = 's32[1]{0}', space=sflag, size = 0x4, scoped, tag = 'scoped memory for rnn_transition_forward.1']
    #allocation6 [shape = 'u8[65536]{0}', space=vmem, size = 0x10000, scoped, tag = 'input window, operand 8, single buffered']
    #allocation7 [shape = 'u8[65536]{0}', space=vmem, size = 0x10000, scoped, tag = 'input window, operand 9, single buffered']
    #allocation8 [shape = 's32[1]{0}', space=sflag, size = 0x4, scoped, tag = 'scoped memory for rnn_transition_forward.1']
    #allocation9 [shape = 'u8[32768]{0}', space=vmem, size = 0x8000, scoped, tag = 'input window, operand 11, single buffered']
    #allocation10 [shape = 'u8[32768]{0}', space=vmem, size = 0x8000, scoped, tag = 'input window, operand 13, single buffered']
    #allocation11 [shape = 's32[1]{0}', space=sflag, size = 0x4, scoped, tag = 'scoped memory for rnn_transition_forward.1']
    #allocation12 [shape = 'u8[65536]{0}', space=vmem, size = 0x10000, scoped, tag = 'input window, operand 15, single buffered']
    %23 = vsyncpa [#allocation3], 0
    %24 = vsyncpa [#allocation5], 0
    %25 = vsyncpa [#allocation8], 0
    %26 = vsyncpa [#allocation11], 0
    // Predicated region
    $region2: #{rnn_transition_forward.1} parent=1 // pred_check
      _
    $region3: #{rnn_transition_forward.1} parent=1 // pred_check_branch
      %28 = sbr.rel (0) target = $region5
    $region4: #{rnn_transition_forward.1} parent=1 // pred_region
      _
    $region5: #{rnn_transition_forward.1} parent=1 // pred_fallthru
      _
    // Predicated region
    $region6: #{rnn_transition_forward.1} parent=1 // pred_check
      _
    $region7: #{rnn_transition_forward.1} parent=1 // pred_check_branch
      %30 = sbr.rel (0) target = $region9
    $region8: #{rnn_transition_forward.1} parent=1 // pred_region
      _
    $region9: #{rnn_transition_forward.1} parent=1 // pred_fallthru
      _
    // Predicated region
    $region10: #{rnn_transition_forward.1} parent=1 // pred_check
      _
    $region11: #{rnn_transition_forward.1} parent=1 // pred_check_branch
      %32 = sbr.rel (0) target = $region13
    $region12: #{rnn_transition_forward.1} parent=1 // pred_region
      _
    $region13: #{rnn_transition_forward.1} parent=1 // pred_fallthru
      _
    // Predicated region
    $region14: #{rnn_transition_forward.1} parent=1 // pred_check
      _
    $region15: #{rnn_transition_forward.1} parent=1 // pred_check_branch
      %34 = sbr.rel (0) target = $region17
    $region16: #{rnn_transition_forward.1} parent=1 // pred_region
      _
    $region17: #{rnn_transition_forward.1} parent=1 // pred_fallthru
      _
    // Predicated region
    $region18: #{rnn_transition_forward.1} parent=1 // pred_check
      _
    $region19: #{rnn_transition_forward.1} parent=1 // pred_check_branch
      %36 = sbr.rel (0) target = $region21
    $region20: #{rnn_transition_forward.1} parent=1 // pred_region
      %s38 = ssub.s32 1024, 1024
      %39 = vsyncadd [#allocation3], %s38
      %s40 = sshll.u32 [#allocation2], 4
      %s41 = int_to_ptr.vmem [resolvable:$true] %s40
      %46 = dma.hbm_to_vmem [thread:$0]  %s4, 1024, %s41, [#allocation3], 64, 64, 4
    $region21: #{rnn_transition_forward.1} parent=1 // pred_fallthru
      _
    // Predicated region
    $region22: #{rnn_transition_forward.1} parent=1 // pred_check
      _
    $region23: #{rnn_transition_forward.1} parent=1 // pred_check_branch
      %48 = sbr.rel (0) target = $region25
    $region24: #{rnn_transition_forward.1} parent=1 // pred_region
      _
    $region25: #{rnn_transition_forward.1} parent=1 // pred_fallthru
      _
    // Predicated region
    $region26: #{rnn_transition_forward.1} parent=1 // pred_check
      _
    $region27: #{rnn_transition_forward.1} parent=1 // pred_check_branch
      %50 = sbr.rel (0) target = $region29
    $region28: #{rnn_transition_forward.1} parent=1 // pred_region
      %s52 = ssub.s32 1024, 1024
      %53 = vsyncadd [#allocation5], %s52
      %s54 = sshll.u32 [#allocation4], 4
      %s55 = int_to_ptr.vmem [resolvable:$true] %s54
      %60 = dma.hbm_to_vmem [thread:$0]  %s6, 1024, %s55, [#allocation5], 64, 64, 4
    $region29: #{rnn_transition_forward.1} parent=1 // pred_fallthru
      _
    // Predicated region
    $region30: #{rnn_transition_forward.1} parent=1 // pred_check
      _
    $region31: #{rnn_transition_forward.1} parent=1 // pred_check_branch
      %62 = sbr.rel (0) target = $region33
    $region32: #{rnn_transition_forward.1} parent=1 // pred_region
      _
    $region33: #{rnn_transition_forward.1} parent=1 // pred_fallthru
      _
    // Predicated region
    $region34: #{rnn_transition_forward.1} parent=1 // pred_check
      _
    $region35: #{rnn_transition_forward.1} parent=1 // pred_check_branch
      %64 = sbr.rel (0) target = $region37
    $region36: #{rnn_transition_forward.1} parent=1 // pred_region
      %s66 = ssub.s32 2048, 2048
      %67 = vsyncadd [#allocation5], %s66
      %s68 = sshll.u32 [#allocation6], 4
      %s69 = int_to_ptr.vmem [resolvable:$true] %s68
      %74 = dma.hbm_to_vmem [thread:$0]  %s8, 2048, %s69, [#allocation5], 128, 128, 8
    $region37: #{rnn_transition_forward.1} parent=1 // pred_fallthru
      _
    // Predicated region
    $region38: #{rnn_transition_forward.1} parent=1 // pred_check
      _
    $region39: #{rnn_transition_forward.1} parent=1 // pred_check_branch
      %76 = sbr.rel (0) target = $region41
    $region40: #{rnn_transition_forward.1} parent=1 // pred_region
      %s78 = ssub.s32 2048, 2048
      %79 = vsyncadd [#allocation8], %s78
      %s80 = sshll.u32 [#allocation7], 4
      %s81 = int_to_ptr.vmem [resolvable:$true] %s80
      %86 = dma.hbm_to_vmem [thread:$0]  %s9, 2048, %s81, [#allocation8], 128, 128, 8
    $region41: #{rnn_transition_forward.1} parent=1 // pred_fallthru
      _
    // Predicated region
    $region42: #{rnn_transition_forward.1} parent=1 // pred_check
      _
    $region43: #{rnn_transition_forward.1} parent=1 // pred_check_branch
      %88 = sbr.rel (0) target = $region45
    $region44: #{rnn_transition_forward.1} parent=1 // pred_region
      _
    $region45: #{rnn_transition_forward.1} parent=1 // pred_fallthru
      _
    // Predicated region
    $region46: #{rnn_transition_forward.1} parent=1 // pred_check
      _
    $region47: #{rnn_transition_forward.1} parent=1 // pred_check_branch
      %90 = sbr.rel (0) target = $region49
    $region48: #{rnn_transition_forward.1} parent=1 // pred_region
      %s92 = ssub.s32 1024, 1024
      %93 = vsyncadd [#allocation8], %s92
      %s94 = sshll.u32 [#allocation9], 4
      %s95 = int_to_ptr.vmem [resolvable:$true] %s94
      %100 = dma.hbm_to_vmem [thread:$0]  %s11, 1024, %s95, [#allocation8], 64, 64, 4
    $region49: #{rnn_transition_forward.1} parent=1 // pred_fallthru
      _
    // Predicated region
    $region50: #{rnn_transition_forward.1} parent=1 // pred_check
      _
    $region51: #{rnn_transition_forward.1} parent=1 // pred_check_branch
      %102 = sbr.rel (0) target = $region53
    $region52: #{rnn_transition_forward.1} parent=1 // pred_region
      _
    $region53: #{rnn_transition_forward.1} parent=1 // pred_fallthru
      _
    // Predicated region
    $region54: #{rnn_transition_forward.1} parent=1 // pred_check
      _
    $region55: #{rnn_transition_forward.1} parent=1 // pred_check_branch
      %104 = sbr.rel (0) target = $region57
    $region56: #{rnn_transition_forward.1} parent=1 // pred_region
      %s106 = ssub.s32 1024, 1024
      %107 = vsyncadd [#allocation11], %s106
      %s108 = sshll.u32 [#allocation10], 4
      %s109 = int_to_ptr.vmem [resolvable:$true] %s108
      %114 = dma.hbm_to_vmem [thread:$0]  %s13, 1024, %s109, [#allocation11], 64, 64, 4
    $region57: #{rnn_transition_forward.1} parent=1 // pred_fallthru
      _
    // Predicated region
    $region58: #{rnn_transition_forward.1} parent=1 // pred_check
      _
    $region59: #{rnn_transition_forward.1} parent=1 // pred_check_branch
      %116 = sbr.rel (0) target = $region61
    $region60: #{rnn_transition_forward.1} parent=1 // pred_region
      _
    $region61: #{rnn_transition_forward.1} parent=1 // pred_fallthru
      _
    // Predicated region
    $region62: #{rnn_transition_forward.1} parent=1 // pred_check
      _
    $region63: #{rnn_transition_forward.1} parent=1 // pred_check_branch
      %118 = sbr.rel (0) target = $region65
    $region64: #{rnn_transition_forward.1} parent=1 // pred_region
      %s120 = ssub.s32 2048, 2048
      %121 = vsyncadd [#allocation11], %s120
      %s122 = sshll.u32 [#allocation12], 4
      %s123 = int_to_ptr.vmem [resolvable:$true] %s122
      %128 = dma.hbm_to_vmem [thread:$0]  %s15, 2048, %s123, [#allocation11], 128, 128, 8
    $region65: #{rnn_transition_forward.1} parent=1 // pred_fallthru
      _
    // Predicated region
    $region66: #{rnn_transition_forward.1} parent=1 // pred_check
      _
    $region67: #{rnn_transition_forward.1} parent=1 // pred_check_branch
      %130 = sbr.rel (0) target = $region69
    $region68: #{rnn_transition_forward.1} parent=1 // pred_region
      %131 = dma.done [#allocation3], 1024
    $region69: #{rnn_transition_forward.1} parent=1 // pred_fallthru
      _
    // Predicated region
    $region70: #{rnn_transition_forward.1} parent=1 // pred_check
      _
    $region71: #{rnn_transition_forward.1} parent=1 // pred_check_branch
      %133 = sbr.rel (0) target = $region73
    $region72: #{rnn_transition_forward.1} parent=1 // pred_region
      %134 = dma.done [#allocation5], 1024
    $region73: #{rnn_transition_forward.1} parent=1 // pred_fallthru
      _
    // Predicated region
    $region74: #{rnn_transition_forward.1} parent=1 // pred_check
      _
    $region75: #{rnn_transition_forward.1} parent=1 // pred_check_branch
      %136 = sbr.rel (0) target = $region77
    $region76: #{rnn_transition_forward.1} parent=1 // pred_region
      %137 = dma.done [#allocation5], 2048
    $region77: #{rnn_transition_forward.1} parent=1 // pred_fallthru
      _
    // Predicated region
    $region78: #{rnn_transition_forward.1} parent=1 // pred_check
      _
    $region79: #{rnn_transition_forward.1} parent=1 // pred_check_branch
      %139 = sbr.rel (0) target = $region81
    $region80: #{rnn_transition_forward.1} parent=1 // pred_region
      %140 = dma.done [#allocation8], 2048
    $region81: #{rnn_transition_forward.1} parent=1 // pred_fallthru
      _
    // Predicated region
    $region82: #{rnn_transition_forward.1} parent=1 // pred_check
      _
    $region83: #{rnn_transition_forward.1} parent=1 // pred_check_branch
      %142 = sbr.rel (0) target = $region85
    $region84: #{rnn_transition_forward.1} parent=1 // pred_region
      %143 = dma.done [#allocation8], 1024
    $region85: #{rnn_transition_forward.1} parent=1 // pred_fallthru
      _
    // Predicated region
    $region86: #{rnn_transition_forward.1} parent=1 // pred_check
      _
    $region87: #{rnn_transition_forward.1} parent=1 // pred_check_branch
      %145 = sbr.rel (0) target = $region89
    $region88: #{rnn_transition_forward.1} parent=1 // pred_region
      %146 = dma.done [#allocation11], 1024
    $region89: #{rnn_transition_forward.1} parent=1 // pred_fallthru
      _
    // Predicated region
    $region90: #{rnn_transition_forward.1} parent=1 // pred_check
      _
    $region91: #{rnn_transition_forward.1} parent=1 // pred_check_branch
      %148 = sbr.rel (0) target = $region93
    $region92: #{rnn_transition_forward.1} parent=1 // pred_region
      %149 = dma.done [#allocation11], 2048
    $region93: #{rnn_transition_forward.1} parent=1 // pred_fallthru
      _
    %v151 = vld [vmem:[%s2] sm:$0xff]
    %v152 = vpack.c.bf16 %v151, %v151
    %v153 = vld [vmem:[%s0] sm:$0xf]
    %v154 = vld [vmem:[%s3] sm:$0xf]
    %v155 = vld [vmem:[%s3 + $0x4] sm:$0xf]
    %v156 = vld [vmem:[%s3 + $0x8] sm:$0xf]
    %v157 = vld [vmem:[%s3 + $0xc] sm:$0xf]
    %v158 = vld [vmem:[%s3 + $0x10] sm:$0xf]
    %v159 = vld [vmem:[%s3 + $0x14] sm:$0xf]
    %v160 = vld [vmem:[%s3 + $0x18] sm:$0xf]
    %v161 = vld [vmem:[%s3 + $0x1c] sm:$0xf]
    %v162 = vld [vmem:[%s3 + $0x20] sm:$0xf]
    %v163 = vld [vmem:[%s3 + $0x24] sm:$0xf]
    %v164 = vld [vmem:[%s3 + $0x28] sm:$0xf]
    %v165 = vld [vmem:[%s3 + $0x2c] sm:$0xf]
    %v166 = vld [vmem:[%s3 + $0x30] sm:$0xf]
    %v167 = vld [vmem:[%s3 + $0x34] sm:$0xf]
    %v168 = vld [vmem:[%s3 + $0x38] sm:$0xf]
    %v169 = vld [vmem:[%s3 + $0x3c] sm:$0xf]
    %v170 = vld [vmem:[%s1] sm:$0xf]
    %v171 = vld [vmem:[#allocation2] sm:$0xf]
    %v172 = vld [vmem:[#allocation2 + $0x4] sm:$0xf]
    %v173 = vld [vmem:[#allocation2 + $0x8] sm:$0xf]
    %v174 = vld [vmem:[#allocation2 + $0xc] sm:$0xf]
    %v175 = vld [vmem:[#allocation2 + $0x10] sm:$0xf]
    %v176 = vld [vmem:[#allocation2 + $0x14] sm:$0xf]
    %v177 = vld [vmem:[#allocation2 + $0x18] sm:$0xf]
    %v178 = vld [vmem:[#allocation2 + $0x1c] sm:$0xf]
    %v179 = vld [vmem:[#allocation2 + $0x20] sm:$0xf]
    %v180 = vld [vmem:[#allocation2 + $0x24] sm:$0xf]
    %v181 = vld [vmem:[#allocation2 + $0x28] sm:$0xf]
    %v182 = vld [vmem:[#allocation2 + $0x2c] sm:$0xf]
    %v183 = vld [vmem:[#allocation2 + $0x30] sm:$0xf]
    %v184 = vld [vmem:[#allocation2 + $0x34] sm:$0xf]
    %v185 = vld [vmem:[#allocation2 + $0x38] sm:$0xf]
    %v186 = vld [vmem:[#allocation2 + $0x3c] sm:$0xf]
    %v203 = vunpack.c.l.b16 %v171
    %v204 = vunpack.c.l.b16 %v172
    %v205 = vunpack.c.l.b16 %v173
    %v206 = vunpack.c.l.b16 %v174
    %v207 = vunpack.c.l.b16 %v175
    %v208 = vunpack.c.l.b16 %v176
    %v209 = vunpack.c.l.b16 %v177
    %v210 = vunpack.c.l.b16 %v178
    %v211 = vunpack.c.l.b16 %v179
    %v212 = vunpack.c.l.b16 %v180
    %v213 = vunpack.c.l.b16 %v181
    %v214 = vunpack.c.l.b16 %v182
    %v215 = vunpack.c.l.b16 %v183
    %v216 = vunpack.c.l.b16 %v184
    %v217 = vunpack.c.l.b16 %v185
    %v218 = vunpack.c.l.b16 %v186
    %v219 = vpack.c.b16 %v204, %v203
    %v220 = vpack.c.b16 %v206, %v205
    %v221 = vpack.c.b16 %v208, %v207
    %v222 = vpack.c.b16 %v210, %v209
    %v223 = vpack.c.b16 %v212, %v211
    %v224 = vpack.c.b16 %v214, %v213
    %v225 = vpack.c.b16 %v216, %v215
    %v226 = vpack.c.b16 %v218, %v217
    %235 = vmatprep.subr.bf16.mxu0 0
    %236 = vmatpush1.bf16.msra.mxu0 %v219
    %237 = vmatprep.subr.bf16.mxu0 0
    %238 = vmatpush1.bf16.msra.mxu0 %v220
    %239 = vmatprep.subr.bf16.mxu0 0
    %240 = vmatpush1.bf16.msra.mxu0 %v221
    %241 = vmatprep.subr.bf16.mxu0 0
    %242 = vmatpush1.bf16.msra.mxu0 %v222
    %243 = vmatprep.subr.bf16.mxu0 0
    %244 = vmatpush1.bf16.msra.mxu0 %v223
    %245 = vmatprep.subr.bf16.mxu0 0
    %246 = vmatpush1.bf16.msra.mxu0 %v224
    %247 = vmatprep.subr.bf16.mxu0 0
    %248 = vmatpush1.bf16.msra.mxu0 %v225
    %249 = vmatprep.subr.bf16.mxu0 0
    %250 = vmatpush1.bf16.msra.mxu0 %v226
    %251 = vmatprep.subr.bf16.mxu0 0
    %252 = vmatpush1.bf16.msra.mxu0 0
    %253 = vmatprep.subr.bf16.mxu0 0
    %254 = vmatpush1.bf16.msra.mxu0 0
    %255 = vmatprep.subr.bf16.mxu0 0
    %256 = vmatpush1.bf16.msra.mxu0 0
    %257 = vmatprep.subr.bf16.mxu0 0
    %258 = vmatpush1.bf16.msra.mxu0 0
    %259 = vmatprep.subr.bf16.mxu0 0
    %260 = vmatpush1.bf16.msra.mxu0 0
    %261 = vmatprep.subr.bf16.mxu0 0
    %262 = vmatpush1.bf16.msra.mxu0 0
    %263 = vmatprep.subr.bf16.mxu0 0
    %264 = vmatpush1.bf16.msra.mxu0 0
    %265 = vmatprep.subr.bf16.mxu0 0
    %266 = vmatpush1.bf16.msra.mxu0 0
    %267 = vmatprep.mubr.bf16.mxu0 0
    %268 = vmatmul.mubr.bf16.gmra.mrb[0].mxu0 %v170
    %v269 = vpop.f32.mrb[0].mxu0
    %v270 = vadd.f32 0.0, %v269
    %v271 = vpop.f32.mrb[0].mxu0
    %v272 = vpop.f32.mrb[0].mxu0
    %v273 = vpop.f32.mrb[0].mxu0
    %274 = vdwg.mxu0
    %v291 = vunpack.c.l.b16 %v154
    %v292 = vunpack.c.l.b16 %v155
    %v293 = vunpack.c.l.b16 %v156
    %v294 = vunpack.c.l.b16 %v157
    %v295 = vunpack.c.l.b16 %v158
    %v296 = vunpack.c.l.b16 %v159
    %v297 = vunpack.c.l.b16 %v160
    %v298 = vunpack.c.l.b16 %v161
    %v299 = vunpack.c.l.b16 %v162
    %v300 = vunpack.c.l.b16 %v163
    %v301 = vunpack.c.l.b16 %v164
    %v302 = vunpack.c.l.b16 %v165
    %v303 = vunpack.c.l.b16 %v166
    %v304 = vunpack.c.l.b16 %v167
    %v305 = vunpack.c.l.b16 %v168
    %v306 = vunpack.c.l.b16 %v169
    %v307 = vpack.c.b16 %v292, %v291
    %v308 = vpack.c.b16 %v294, %v293
    %v309 = vpack.c.b16 %v296, %v295
    %v310 = vpack.c.b16 %v298, %v297
    %v311 = vpack.c.b16 %v300, %v299
    %v312 = vpack.c.b16 %v302, %v301
    %v313 = vpack.c.b16 %v304, %v303
    %v314 = vpack.c.b16 %v306, %v305
    %323 = vmatprep.subr.bf16.mxu0 0
    %324 = vmatpush1.bf16.msra.mxu0 %v307
    %325 = vmatprep.subr.bf16.mxu0 0
    %326 = vmatpush1.bf16.msra.mxu0 %v308
    %327 = vmatprep.subr.bf16.mxu0 0
    %328 = vmatpush1.bf16.msra.mxu0 %v309
    %329 = vmatprep.subr.bf16.mxu0 0
    %330 = vmatpush1.bf16.msra.mxu0 %v310
    %331 = vmatprep.subr.bf16.mxu0 0
    %332 = vmatpush1.bf16.msra.mxu0 %v311
    %333 = vmatprep.subr.bf16.mxu0 0
    %334 = vmatpush1.bf16.msra.mxu0 %v312
    %335 = vmatprep.subr.bf16.mxu0 0
    %336 = vmatpush1.bf16.msra.mxu0 %v313
    %337 = vmatprep.subr.bf16.mxu0 0
    %338 = vmatpush1.bf16.msra.mxu0 %v314
    %339 = vmatprep.subr.bf16.mxu0 0
    %340 = vmatpush1.bf16.msra.mxu0 0
    %341 = vmatprep.subr.bf16.mxu0 0
    %342 = vmatpush1.bf16.msra.mxu0 0
    %343 = vmatprep.subr.bf16.mxu0 0
    %344 = vmatpush1.bf16.msra.mxu0 0
    %345 = vmatprep.subr.bf16.mxu0 0
    %346 = vmatpush1.bf16.msra.mxu0 0
    %347 = vmatprep.subr.bf16.mxu0 0
    %348 = vmatpush1.bf16.msra.mxu0 0
    %349 = vmatprep.subr.bf16.mxu0 0
    %350 = vmatpush1.bf16.msra.mxu0 0
    %351 = vmatprep.subr.bf16.mxu0 0
    %352 = vmatpush1.bf16.msra.mxu0 0
    %353 = vmatprep.subr.bf16.mxu0 0
    %354 = vmatpush1.bf16.msra.mxu0 0
    %355 = vmatprep.mubr.bf16.mxu0 0
    %356 = vmatmul.mubr.bf16.gmra.mrb[0].mxu0 %v153
    %v357 = vpop.f32.mrb[0].mxu0
    %v358 = vadd.f32 %v270, %v357
    %v359 = vpop.f32.mrb[0].mxu0
    %v360 = vpop.f32.mrb[0].mxu0
    %v361 = vpop.f32.mrb[0].mxu0
    %362 = vdwg.mxu0
    %v363 = vld [vmem:[%s5] sm:$0x1]
    %v365 = vlaneseq
    %v366 = vshrl.u32 %v365, 7
    %v367 = vsub.s32 0, %v366
    %v368 = vrot.slane %v363, %v367
    %v370 = vadd.f32 %v358, %v368
    %v371 = vmax.f32 %v370, 0.0
    %v372 = vpack.c.bf16 %v371, %v371
    %v373 = vld [vmem:[#allocation4] sm:$0xf]
    %v374 = vld [vmem:[#allocation4 + $0x4] sm:$0xf]
    %v375 = vld [vmem:[#allocation4 + $0x8] sm:$0xf]
    %v376 = vld [vmem:[#allocation4 + $0xc] sm:$0xf]
    %v377 = vld [vmem:[#allocation4 + $0x10] sm:$0xf]
    %v378 = vld [vmem:[#allocation4 + $0x14] sm:$0xf]
    %v379 = vld [vmem:[#allocation4 + $0x18] sm:$0xf]
    %v380 = vld [vmem:[#allocation4 + $0x1c] sm:$0xf]
    %v381 = vld [vmem:[#allocation4 + $0x20] sm:$0xf]
    %v382 = vld [vmem:[#allocation4 + $0x24] sm:$0xf]
    %v383 = vld [vmem:[#allocation4 + $0x28] sm:$0xf]
    %v384 = vld [vmem:[#allocation4 + $0x2c] sm:$0xf]
    %v385 = vld [vmem:[#allocation4 + $0x30] sm:$0xf]
    %v386 = vld [vmem:[#allocation4 + $0x34] sm:$0xf]
    %v387 = vld [vmem:[#allocation4 + $0x38] sm:$0xf]
    %v388 = vld [vmem:[#allocation4 + $0x3c] sm:$0xf]
    %v389 = vld [vmem:[%s7] sm:$0x1]
    %v391 = vlaneseq
    %v392 = vshrl.u32 %v391, 7
    %v393 = vsub.s32 0, %v392
    %v394 = vrot.slane %v389, %v393
    %v412 = vunpack.c.l.b16 %v373
    %v413 = vunpack.c.l.b16 %v374
    %v414 = vunpack.c.l.b16 %v375
    %v415 = vunpack.c.l.b16 %v376
    %v416 = vunpack.c.l.b16 %v377
    %v417 = vunpack.c.l.b16 %v378
    %v418 = vunpack.c.l.b16 %v379
    %v419 = vunpack.c.l.b16 %v380
    %v420 = vunpack.c.l.b16 %v381
    %v421 = vunpack.c.l.b16 %v382
    %v422 = vunpack.c.l.b16 %v383
    %v423 = vunpack.c.l.b16 %v384
    %v424 = vunpack.c.l.b16 %v385
    %v425 = vunpack.c.l.b16 %v386
    %v426 = vunpack.c.l.b16 %v387
    %v427 = vunpack.c.l.b16 %v388
    %v428 = vpack.c.b16 %v413, %v412
    %v429 = vpack.c.b16 %v415, %v414
    %v430 = vpack.c.b16 %v417, %v416
    %v431 = vpack.c.b16 %v419, %v418
    %v432 = vpack.c.b16 %v421, %v420
    %v433 = vpack.c.b16 %v423, %v422
    %v434 = vpack.c.b16 %v425, %v424
    %v435 = vpack.c.b16 %v427, %v426
    %444 = vmatprep.subr.bf16.mxu0 0
    %445 = vmatpush1.bf16.msra.mxu0 %v428
    %446 = vmatprep.subr.bf16.mxu0 0
    %447 = vmatpush1.bf16.msra.mxu0 %v429
    %448 = vmatprep.subr.bf16.mxu0 0
    %449 = vmatpush1.bf16.msra.mxu0 %v430
    %450 = vmatprep.subr.bf16.mxu0 0
    %451 = vmatpush1.bf16.msra.mxu0 %v431
    %452 = vmatprep.subr.bf16.mxu0 0
    %453 = vmatpush1.bf16.msra.mxu0 %v432
    %454 = vmatprep.subr.bf16.mxu0 0
    %455 = vmatpush1.bf16.msra.mxu0 %v433
    %456 = vmatprep.subr.bf16.mxu0 0
    %457 = vmatpush1.bf16.msra.mxu0 %v434
    %458 = vmatprep.subr.bf16.mxu0 0
    %459 = vmatpush1.bf16.msra.mxu0 %v435
    %460 = vmatprep.subr.bf16.mxu0 0
    %461 = vmatpush1.bf16.msra.mxu0 0
    %462 = vmatprep.subr.bf16.mxu0 0
    %463 = vmatpush1.bf16.msra.mxu0 0
    %464 = vmatprep.subr.bf16.mxu0 0
    %465 = vmatpush1.bf16.msra.mxu0 0
    %466 = vmatprep.subr.bf16.mxu0 0
    %467 = vmatpush1.bf16.msra.mxu0 0
    %468 = vmatprep.subr.bf16.mxu0 0
    %469 = vmatpush1.bf16.msra.mxu0 0
    %470 = vmatprep.subr.bf16.mxu0 0
    %471 = vmatpush1.bf16.msra.mxu0 0
    %472 = vmatprep.subr.bf16.mxu0 0
    %473 = vmatpush1.bf16.msra.mxu0 0
    %474 = vmatprep.subr.bf16.mxu0 0
    %475 = vmatpush1.bf16.msra.mxu0 0
    %476 = vmatprep.mubr.bf16.mxu0 0
    %477 = vmatmul.mubr.bf16.gmra.mrb[0].mxu0 %v372
    %v478 = vpop.f32.mrb[0].mxu0
    %v479 = vadd.f32 %v394, %v478
    %v480 = vpop.f32.mrb[0].mxu0
    %v481 = vpop.f32.mrb[0].mxu0
    %v482 = vpop.f32.mrb[0].mxu0
    %483 = vdwg.mxu0
    %v484 = vmax.f32 %v479, 0.0
    %v485 = vpack.c.bf16 %v484, %v484
    %v486 = vld [vmem:[#allocation6] sm:$0xff]
    %v487 = vld [vmem:[#allocation6 + $0x8] sm:$0xff]
    %v488 = vld [vmem:[#allocation6 + $0x10] sm:$0xff]
    %v489 = vld [vmem:[#allocation6 + $0x18] sm:$0xff]
    %v490 = vld [vmem:[#allocation6 + $0x20] sm:$0xff]
    %v491 = vld [vmem:[#allocation6 + $0x28] sm:$0xff]
    %v492 = vld [vmem:[#allocation6 + $0x30] sm:$0xff]
    %v493 = vld [vmem:[#allocation6 + $0x38] sm:$0xff]
    %v494 = vld [vmem:[#allocation6 + $0x40] sm:$0xff]
    %v495 = vld [vmem:[#allocation6 + $0x48] sm:$0xff]
    %v496 = vld [vmem:[#allocation6 + $0x50] sm:$0xff]
    %v497 = vld [vmem:[#allocation6 + $0x58] sm:$0xff]
    %v498 = vld [vmem:[#allocation6 + $0x60] sm:$0xff]
    %v499 = vld [vmem:[#allocation6 + $0x68] sm:$0xff]
    %v500 = vld [vmem:[#allocation6 + $0x70] sm:$0xff]
    %v501 = vld [vmem:[#allocation6 + $0x78] sm:$0xff]
    %v502 = vld [vmem:[#allocation7] sm:$0xff]
    %v503 = vld [vmem:[#allocation7 + $0x8] sm:$0xff]
    %v504 = vld [vmem:[#allocation7 + $0x10] sm:$0xff]
    %v505 = vld [vmem:[#allocation7 + $0x18] sm:$0xff]
    %v506 = vld [vmem:[#allocation7 + $0x20] sm:$0xff]
    %v507 = vld [vmem:[#allocation7 + $0x28] sm:$0xff]
    %v508 = vld [vmem:[#allocation7 + $0x30] sm:$0xff]
    %v509 = vld [vmem:[#allocation7 + $0x38] sm:$0xff]
    %v510 = vld [vmem:[#allocation7 + $0x40] sm:$0xff]
    %v511 = vld [vmem:[#allocation7 + $0x48] sm:$0xff]
    %v512 = vld [vmem:[#allocation7 + $0x50] sm:$0xff]
    %v513 = vld [vmem:[#allocation7 + $0x58] sm:$0xff]
    %v514 = vld [vmem:[#allocation7 + $0x60] sm:$0xff]
    %v515 = vld [vmem:[#allocation7 + $0x68] sm:$0xff]
    %v516 = vld [vmem:[#allocation7 + $0x70] sm:$0xff]
    %v517 = vld [vmem:[#allocation7 + $0x78] sm:$0xff]
    %v534 = vunpack.c.l.b16 %v502
    %v535 = vunpack.c.h.b16 %v502
    %v536 = vunpack.c.l.b16 %v503
    %v537 = vunpack.c.h.b16 %v503
    %v538 = vunpack.c.l.b16 %v504
    %v539 = vunpack.c.h.b16 %v504
    %v540 = vunpack.c.l.b16 %v505
    %v541 = vunpack.c.h.b16 %v505
    %v542 = vunpack.c.l.b16 %v506
    %v543 = vunpack.c.h.b16 %v506
    %v544 = vunpack.c.l.b16 %v507
    %v545 = vunpack.c.h.b16 %v507
    %v546 = vunpack.c.l.b16 %v508
    %v547 = vunpack.c.h.b16 %v508
    %v548 = vunpack.c.l.b16 %v509
    %v549 = vunpack.c.h.b16 %v509
    %v550 = vunpack.c.l.b16 %v510
    %v551 = vunpack.c.h.b16 %v510
    %v552 = vunpack.c.l.b16 %v511
    %v553 = vunpack.c.h.b16 %v511
    %v554 = vunpack.c.l.b16 %v512
    %v555 = vunpack.c.h.b16 %v512
    %v556 = vunpack.c.l.b16 %v513
    %v557 = vunpack.c.h.b16 %v513
    %v558 = vunpack.c.l.b16 %v514
    %v559 = vunpack.c.h.b16 %v514
    %v560 = vunpack.c.l.b16 %v515
    %v561 = vunpack.c.h.b16 %v515
    %v562 = vunpack.c.l.b16 %v516
    %v563 = vunpack.c.h.b16 %v516
    %v564 = vunpack.c.l.b16 %v517
    %v565 = vunpack.c.h.b16 %v517
    %v566 = vpack.c.b16 %v536, %v534
    %v567 = vpack.c.b16 %v537, %v535
    %v568 = vpack.c.b16 %v540, %v538
    %v569 = vpack.c.b16 %v541, %v539
    %v570 = vpack.c.b16 %v544, %v542
    %v571 = vpack.c.b16 %v545, %v543
    %v572 = vpack.c.b16 %v548, %v546
    %v573 = vpack.c.b16 %v549, %v547
    %v574 = vpack.c.b16 %v552, %v550
    %v575 = vpack.c.b16 %v553, %v551
    %v576 = vpack.c.b16 %v556, %v554
    %v577 = vpack.c.b16 %v557, %v555
    %v578 = vpack.c.b16 %v560, %v558
    %v579 = vpack.c.b16 %v561, %v559
    %v580 = vpack.c.b16 %v564, %v562
    %v581 = vpack.c.b16 %v565, %v563
    %598 = vmatprep.subr.bf16.mxu0 %v567
    %599 = vmatpush1.bf16.msra.mxu0 %v566
    %600 = vmatprep.subr.bf16.mxu0 %v569
    %601 = vmatpush1.bf16.msra.mxu0 %v568
    %602 = vmatprep.subr.bf16.mxu0 %v571
    %603 = vmatpush1.bf16.msra.mxu0 %v570
    %604 = vmatprep.subr.bf16.mxu0 %v573
    %605 = vmatpush1.bf16.msra.mxu0 %v572
    %606 = vmatprep.subr.bf16.mxu0 %v575
    %607 = vmatpush1.bf16.msra.mxu0 %v574
    %608 = vmatprep.subr.bf16.mxu0 %v577
    %609 = vmatpush1.bf16.msra.mxu0 %v576
    %610 = vmatprep.subr.bf16.mxu0 %v579
    %611 = vmatpush1.bf16.msra.mxu0 %v578
    %612 = vmatprep.subr.bf16.mxu0 %v581
    %613 = vmatpush1.bf16.msra.mxu0 %v580
    %614 = vmatprep.subr.bf16.mxu0 0
    %615 = vmatpush1.bf16.msra.mxu0 0
    %616 = vmatprep.subr.bf16.mxu0 0
    %617 = vmatpush1.bf16.msra.mxu0 0
    %618 = vmatprep.subr.bf16.mxu0 0
    %619 = vmatpush1.bf16.msra.mxu0 0
    %620 = vmatprep.subr.bf16.mxu0 0
    %621 = vmatpush1.bf16.msra.mxu0 0
    %622 = vmatprep.subr.bf16.mxu0 0
    %623 = vmatpush1.bf16.msra.mxu0 0
    %624 = vmatprep.subr.bf16.mxu0 0
    %625 = vmatpush1.bf16.msra.mxu0 0
    %626 = vmatprep.subr.bf16.mxu0 0
    %627 = vmatpush1.bf16.msra.mxu0 0
    %628 = vmatprep.subr.bf16.mxu0 0
    %629 = vmatpush1.bf16.msra.mxu0 0
    %630 = vmatprep.mubr.bf16.mxu0 0
    %631 = vmatmul.mubr.bf16.gmra.mrb[0].mxu0 %v152
    %v632 = vpop.f32.mrb[0].mxu0
    %v633 = vadd.f32 0.0, %v632
    %v634 = vpop.f32.mrb[0].mxu0
    %v635 = vadd.f32 0.0, %v634
    %v636 = vpop.f32.mrb[0].mxu0
    %v637 = vpop.f32.mrb[0].mxu0
    %638 = vdwg.mxu0
    %v655 = vunpack.c.l.b16 %v486
    %v656 = vunpack.c.h.b16 %v486
    %v657 = vunpack.c.l.b16 %v487
    %v658 = vunpack.c.h.b16 %v487
    %v659 = vunpack.c.l.b16 %v488
    %v660 = vunpack.c.h.b16 %v488
    %v661 = vunpack.c.l.b16 %v489
    %v662 = vunpack.c.h.b16 %v489
    %v663 = vunpack.c.l.b16 %v490
    %v664 = vunpack.c.h.b16 %v490
    %v665 = vunpack.c.l.b16 %v491
    %v666 = vunpack.c.h.b16 %v491
    %v667 = vunpack.c.l.b16 %v492
    %v668 = vunpack.c.h.b16 %v492
    %v669 = vunpack.c.l.b16 %v493
    %v670 = vunpack.c.h.b16 %v493
    %v671 = vunpack.c.l.b16 %v494
    %v672 = vunpack.c.h.b16 %v494
    %v673 = vunpack.c.l.b16 %v495
    %v674 = vunpack.c.h.b16 %v495
    %v675 = vunpack.c.l.b16 %v496
    %v676 = vunpack.c.h.b16 %v496
    %v677 = vunpack.c.l.b16 %v497
    %v678 = vunpack.c.h.b16 %v497
    %v679 = vunpack.c.l.b16 %v498
    %v680 = vunpack.c.h.b16 %v498
    %v681 = vunpack.c.l.b16 %v499
    %v682 = vunpack.c.h.b16 %v499
    %v683 = vunpack.c.l.b16 %v500
    %v684 = vunpack.c.h.b16 %v500
    %v685 = vunpack.c.l.b16 %v501
    %v686 = vunpack.c.h.b16 %v501
    %v687 = vpack.c.b16 %v657, %v655
    %v688 = vpack.c.b16 %v658, %v656
    %v689 = vpack.c.b16 %v661, %v659
    %v690 = vpack.c.b16 %v662, %v660
    %v691 = vpack.c.b16 %v665, %v663
    %v692 = vpack.c.b16 %v666, %v664
    %v693 = vpack.c.b16 %v669, %v667
    %v694 = vpack.c.b16 %v670, %v668
    %v695 = vpack.c.b16 %v673, %v671
    %v696 = vpack.c.b16 %v674, %v672
    %v697 = vpack.c.b16 %v677, %v675
    %v698 = vpack.c.b16 %v678, %v676
    %v699 = vpack.c.b16 %v681, %v679
    %v700 = vpack.c.b16 %v682, %v680
    %v701 = vpack.c.b16 %v685, %v683
    %v702 = vpack.c.b16 %v686, %v684
    %719 = vmatprep.subr.bf16.mxu0 %v688
    %720 = vmatpush1.bf16.msra.mxu0 %v687
    %721 = vmatprep.subr.bf16.mxu0 %v690
    %722 = vmatpush1.bf16.msra.mxu0 %v689
    %723 = vmatprep.subr.bf16.mxu0 %v692
    %724 = vmatpush1.bf16.msra.mxu0 %v691
    %725 = vmatprep.subr.bf16.mxu0 %v694
    %726 = vmatpush1.bf16.msra.mxu0 %v693
    %727 = vmatprep.subr.bf16.mxu0 %v696
    %728 = vmatpush1.bf16.msra.mxu0 %v695
    %729 = vmatprep.subr.bf16.mxu0 %v698
    %730 = vmatpush1.bf16.msra.mxu0 %v697
    %731 = vmatprep.subr.bf16.mxu0 %v700
    %732 = vmatpush1.bf16.msra.mxu0 %v699
    %733 = vmatprep.subr.bf16.mxu0 %v702
    %734 = vmatpush1.bf16.msra.mxu0 %v701
    %735 = vmatprep.subr.bf16.mxu0 0
    %736 = vmatpush1.bf16.msra.mxu0 0
    %737 = vmatprep.subr.bf16.mxu0 0
    %738 = vmatpush1.bf16.msra.mxu0 0
    %739 = vmatprep.subr.bf16.mxu0 0
    %740 = vmatpush1.bf16.msra.mxu0 0
    %741 = vmatprep.subr.bf16.mxu0 0
    %742 = vmatpush1.bf16.msra.mxu0 0
    %743 = vmatprep.subr.bf16.mxu0 0
    %744 = vmatpush1.bf16.msra.mxu0 0
    %745 = vmatprep.subr.bf16.mxu0 0
    %746 = vmatpush1.bf16.msra.mxu0 0
    %747 = vmatprep.subr.bf16.mxu0 0
    %748 = vmatpush1.bf16.msra.mxu0 0
    %749 = vmatprep.subr.bf16.mxu0 0
    %750 = vmatpush1.bf16.msra.mxu0 0
    %751 = vmatprep.mubr.bf16.mxu0 0
    %752 = vmatmul.mubr.bf16.gmra.mrb[0].mxu0 %v485
    %v753 = vpop.f32.mrb[0].mxu0
    %v754 = vadd.f32 %v633, %v753
    %v755 = vpop.f32.mrb[0].mxu0
    %v756 = vadd.f32 %v635, %v755
    %v757 = vpop.f32.mrb[0].mxu0
    %v758 = vpop.f32.mrb[0].mxu0
    %759 = vdwg.mxu0
    %v760 = vld [vmem:[%s10] sm:$0x3]
    %v762 = vlaneseq
    %v763 = vshrl.u32 %v762, 7
    %v764 = vsub.s32 0, %v763
    %v765 = vrot.slane %v760, %v764
    %v766 = vlaneseq
    %v767 = vshrl.u32 %v766, 7
    %v768 = vsub.s32 1, %v767
    %v769 = vrot.slane %v760, %v768
    %v772 = vadd.f32 %v754, %v765
    %v773 = vadd.f32 %v756, %v769
    %v774 = vxor.u32 %v772, 2147483648
    %v775 = vxor.u32 %v773, 2147483648
    %v776 = vmul.f32 %v774, 1.442695
    %v777 = vpow.pop %v776
    %v778 = vmul.f32 %v775, 1.442695
    %v779 = vpow.pop %v778
    %v780 = vadd.f32 %v777, 1.0
    %v781 = vadd.f32 %v779, 1.0
    %v782 = vrcp.pop %v780
    %v783 = vmul.f32 1.0, %v782
    %v784 = vrcp.pop %v781
    %v785 = vmul.f32 1.0, %v784
    %v786 = vld [vmem:[#allocation9] sm:$0xf]
    %v787 = vld [vmem:[#allocation9 + $0x4] sm:$0xf]
    %v788 = vld [vmem:[#allocation9 + $0x8] sm:$0xf]
    %v789 = vld [vmem:[#allocation9 + $0xc] sm:$0xf]
    %v790 = vld [vmem:[#allocation9 + $0x10] sm:$0xf]
    %v791 = vld [vmem:[#allocation9 + $0x14] sm:$0xf]
    %v792 = vld [vmem:[#allocation9 + $0x18] sm:$0xf]
    %v793 = vld [vmem:[#allocation9 + $0x1c] sm:$0xf]
    %v794 = vld [vmem:[#allocation9 + $0x20] sm:$0xf]
    %v795 = vld [vmem:[#allocation9 + $0x24] sm:$0xf]
    %v796 = vld [vmem:[#allocation9 + $0x28] sm:$0xf]
    %v797 = vld [vmem:[#allocation9 + $0x2c] sm:$0xf]
    %v798 = vld [vmem:[#allocation9 + $0x30] sm:$0xf]
    %v799 = vld [vmem:[#allocation9 + $0x34] sm:$0xf]
    %v800 = vld [vmem:[#allocation9 + $0x38] sm:$0xf]
    %v801 = vld [vmem:[#allocation9 + $0x3c] sm:$0xf]
    %v802 = vld [vmem:[%s12] sm:$0x1]
    %v804 = vlaneseq
    %v805 = vshrl.u32 %v804, 7
    %v806 = vsub.s32 0, %v805
    %v807 = vrot.slane %v802, %v806
    %v825 = vunpack.c.l.b16 %v786
    %v826 = vunpack.c.l.b16 %v787
    %v827 = vunpack.c.l.b16 %v788
    %v828 = vunpack.c.l.b16 %v789
    %v829 = vunpack.c.l.b16 %v790
    %v830 = vunpack.c.l.b16 %v791
    %v831 = vunpack.c.l.b16 %v792
    %v832 = vunpack.c.l.b16 %v793
    %v833 = vunpack.c.l.b16 %v794
    %v834 = vunpack.c.l.b16 %v795
    %v835 = vunpack.c.l.b16 %v796
    %v836 = vunpack.c.l.b16 %v797
    %v837 = vunpack.c.l.b16 %v798
    %v838 = vunpack.c.l.b16 %v799
    %v839 = vunpack.c.l.b16 %v800
    %v840 = vunpack.c.l.b16 %v801
    %v841 = vpack.c.b16 %v826, %v825
    %v842 = vpack.c.b16 %v828, %v827
    %v843 = vpack.c.b16 %v830, %v829
    %v844 = vpack.c.b16 %v832, %v831
    %v845 = vpack.c.b16 %v834, %v833
    %v846 = vpack.c.b16 %v836, %v835
    %v847 = vpack.c.b16 %v838, %v837
    %v848 = vpack.c.b16 %v840, %v839
    %857 = vmatprep.subr.bf16.mxu0 0
    %858 = vmatpush1.bf16.msra.mxu0 %v841
    %859 = vmatprep.subr.bf16.mxu0 0
    %860 = vmatpush1.bf16.msra.mxu0 %v842
    %861 = vmatprep.subr.bf16.mxu0 0
    %862 = vmatpush1.bf16.msra.mxu0 %v843
    %863 = vmatprep.subr.bf16.mxu0 0
    %864 = vmatpush1.bf16.msra.mxu0 %v844
    %865 = vmatprep.subr.bf16.mxu0 0
    %866 = vmatpush1.bf16.msra.mxu0 %v845
    %867 = vmatprep.subr.bf16.mxu0 0
    %868 = vmatpush1.bf16.msra.mxu0 %v846
    %869 = vmatprep.subr.bf16.mxu0 0
    %870 = vmatpush1.bf16.msra.mxu0 %v847
    %871 = vmatprep.subr.bf16.mxu0 0
    %872 = vmatpush1.bf16.msra.mxu0 %v848
    %873 = vmatprep.subr.bf16.mxu0 0
    %874 = vmatpush1.bf16.msra.mxu0 0
    %875 = vmatprep.subr.bf16.mxu0 0
    %876 = vmatpush1.bf16.msra.mxu0 0
    %877 = vmatprep.subr.bf16.mxu0 0
    %878 = vmatpush1.bf16.msra.mxu0 0
    %879 = vmatprep.subr.bf16.mxu0 0
    %880 = vmatpush1.bf16.msra.mxu0 0
    %881 = vmatprep.subr.bf16.mxu0 0
    %882 = vmatpush1.bf16.msra.mxu0 0
    %883 = vmatprep.subr.bf16.mxu0 0
    %884 = vmatpush1.bf16.msra.mxu0 0
    %885 = vmatprep.subr.bf16.mxu0 0
    %886 = vmatpush1.bf16.msra.mxu0 0
    %887 = vmatprep.subr.bf16.mxu0 0
    %888 = vmatpush1.bf16.msra.mxu0 0
    %889 = vmatprep.mubr.bf16.mxu0 0
    %890 = vmatmul.mubr.bf16.gmra.mrb[0].mxu0 %v485
    %v891 = vpop.f32.mrb[0].mxu0
    %v892 = vadd.f32 %v807, %v891
    %v893 = vpop.f32.mrb[0].mxu0
    %v894 = vpop.f32.mrb[0].mxu0
    %v895 = vpop.f32.mrb[0].mxu0
    %896 = vdwg.mxu0
    %v897 = vld [vmem:[#allocation10] sm:$0xf]
    %v898 = vld [vmem:[#allocation10 + $0x4] sm:$0xf]
    %v899 = vld [vmem:[#allocation10 + $0x8] sm:$0xf]
    %v900 = vld [vmem:[#allocation10 + $0xc] sm:$0xf]
    %v901 = vld [vmem:[#allocation10 + $0x10] sm:$0xf]
    %v902 = vld [vmem:[#allocation10 + $0x14] sm:$0xf]
    %v903 = vld [vmem:[#allocation10 + $0x18] sm:$0xf]
    %v904 = vld [vmem:[#allocation10 + $0x1c] sm:$0xf]
    %v905 = vld [vmem:[#allocation10 + $0x20] sm:$0xf]
    %v906 = vld [vmem:[#allocation10 + $0x24] sm:$0xf]
    %v907 = vld [vmem:[#allocation10 + $0x28] sm:$0xf]
    %v908 = vld [vmem:[#allocation10 + $0x2c] sm:$0xf]
    %v909 = vld [vmem:[#allocation10 + $0x30] sm:$0xf]
    %v910 = vld [vmem:[#allocation10 + $0x34] sm:$0xf]
    %v911 = vld [vmem:[#allocation10 + $0x38] sm:$0xf]
    %v912 = vld [vmem:[#allocation10 + $0x3c] sm:$0xf]
    %v913 = vld [vmem:[%s14] sm:$0x1]
    %v915 = vlaneseq
    %v916 = vshrl.u32 %v915, 7
    %v917 = vsub.s32 0, %v916
    %v918 = vrot.slane %v913, %v917
    %v936 = vunpack.c.l.b16 %v897
    %v937 = vunpack.c.l.b16 %v898
    %v938 = vunpack.c.l.b16 %v899
    %v939 = vunpack.c.l.b16 %v900
    %v940 = vunpack.c.l.b16 %v901
    %v941 = vunpack.c.l.b16 %v902
    %v942 = vunpack.c.l.b16 %v903
    %v943 = vunpack.c.l.b16 %v904
    %v944 = vunpack.c.l.b16 %v905
    %v945 = vunpack.c.l.b16 %v906
    %v946 = vunpack.c.l.b16 %v907
    %v947 = vunpack.c.l.b16 %v908
    %v948 = vunpack.c.l.b16 %v909
    %v949 = vunpack.c.l.b16 %v910
    %v950 = vunpack.c.l.b16 %v911
    %v951 = vunpack.c.l.b16 %v912
    %v952 = vpack.c.b16 %v937, %v936
    %v953 = vpack.c.b16 %v939, %v938
    %v954 = vpack.c.b16 %v941, %v940
    %v955 = vpack.c.b16 %v943, %v942
    %v956 = vpack.c.b16 %v945, %v944
    %v957 = vpack.c.b16 %v947, %v946
    %v958 = vpack.c.b16 %v949, %v948
    %v959 = vpack.c.b16 %v951, %v950
    %968 = vmatprep.subr.bf16.mxu0 0
    %969 = vmatpush1.bf16.msra.mxu0 %v952
    %970 = vmatprep.subr.bf16.mxu0 0
    %971 = vmatpush1.bf16.msra.mxu0 %v953
    %972 = vmatprep.subr.bf16.mxu0 0
    %973 = vmatpush1.bf16.msra.mxu0 %v954
    %974 = vmatprep.subr.bf16.mxu0 0
    %975 = vmatpush1.bf16.msra.mxu0 %v955
    %976 = vmatprep.subr.bf16.mxu0 0
    %977 = vmatpush1.bf16.msra.mxu0 %v956
    %978 = vmatprep.subr.bf16.mxu0 0
    %979 = vmatpush1.bf16.msra.mxu0 %v957
    %980 = vmatprep.subr.bf16.mxu0 0
    %981 = vmatpush1.bf16.msra.mxu0 %v958
    %982 = vmatprep.subr.bf16.mxu0 0
    %983 = vmatpush1.bf16.msra.mxu0 %v959
    %984 = vmatprep.subr.bf16.mxu0 0
    %985 = vmatpush1.bf16.msra.mxu0 0
    %986 = vmatprep.subr.bf16.mxu0 0
    %987 = vmatpush1.bf16.msra.mxu0 0
    %988 = vmatprep.subr.bf16.mxu0 0
    %989 = vmatpush1.bf16.msra.mxu0 0
    %990 = vmatprep.subr.bf16.mxu0 0
    %991 = vmatpush1.bf16.msra.mxu0 0
    %992 = vmatprep.subr.bf16.mxu0 0
    %993 = vmatpush1.bf16.msra.mxu0 0
    %994 = vmatprep.subr.bf16.mxu0 0
    %995 = vmatpush1.bf16.msra.mxu0 0
    %996 = vmatprep.subr.bf16.mxu0 0
    %997 = vmatpush1.bf16.msra.mxu0 0
    %998 = vmatprep.subr.bf16.mxu0 0
    %999 = vmatpush1.bf16.msra.mxu0 0
    %1000 = vmatprep.mubr.bf16.mxu0 0
    %1001 = vmatmul.mubr.bf16.gmra.mrb[0].mxu0 %v152
    %v1002 = vpop.f32.mrb[0].mxu0
    %v1003 = vadd.f32 %v918, %v1002
    %v1004 = vpop.f32.mrb[0].mxu0
    %v1005 = vpop.f32.mrb[0].mxu0
    %v1006 = vpop.f32.mrb[0].mxu0
    %1007 = vdwg.mxu0
    %v1008 = vmul.f32 %v783, %v1003
    %v1009 = vadd.f32 %v892, %v1008
    %v1010 = vtanh.pop %v1009
    %v1011 = vsub.f32 %v151, %v1010
    %v1012 = vmul.f32 %v785, %v1011
    %v1013 = vadd.f32 %v1010, %v1012
    %1014 = vst [vmem:[%s16] sm:$0xff] %v1013
    %1016 = vrot.lane.b32.xlu0 %v1013, 120
    %v1017 = vpop.permute.xlu0 %1016
    %1019 = vrot.lane.b32.xlu0 %v1013, 112
    %v1020 = vpop.permute.xlu0 %1019
    %1022 = vrot.lane.b32.xlu0 %v1013, 104
    %v1023 = vpop.permute.xlu0 %1022
    %1025 = vrot.lane.b32.xlu0 %v1013, 96
    %v1026 = vpop.permute.xlu0 %1025
    %1028 = vrot.lane.b32.xlu0 %v1013, 88
    %v1029 = vpop.permute.xlu0 %1028
    %1031 = vrot.lane.b32.xlu0 %v1013, 80
    %v1032 = vpop.permute.xlu0 %1031
    %1034 = vrot.lane.b32.xlu0 %v1013, 72
    %v1035 = vpop.permute.xlu0 %1034
    %1037 = vrot.lane.b32.xlu0 %v1013, 64
    %v1038 = vpop.permute.xlu0 %1037
    %1040 = vrot.lane.b32.xlu0 %v1013, 56
    %v1041 = vpop.permute.xlu0 %1040
    %1043 = vrot.lane.b32.xlu0 %v1013, 48
    %v1044 = vpop.permute.xlu0 %1043
    %1046 = vrot.lane.b32.xlu0 %v1013, 40
    %v1047 = vpop.permute.xlu0 %1046
    %1049 = vrot.lane.b32.xlu0 %v1013, 32
    %v1050 = vpop.permute.xlu0 %1049
    %1052 = vrot.lane.b32.xlu0 %v1013, 24
    %v1053 = vpop.permute.xlu0 %1052
    %1055 = vrot.lane.b32.xlu0 %v1013, 16
    %v1056 = vpop.permute.xlu0 %1055
    %1058 = vrot.lane.b32.xlu0 %v1013, 8
    %v1059 = vpop.permute.xlu0 %1058
    %v1061 = vcombine.low %v1013, %v1020
    %v1062 = vcombine.high %v1013, %v1020
    %v1064 = vunpack.c.l.s4 1983009808
    %v1065 = vunpack.c.0.s8 %v1064
    %v1066 = vlaneseq
    %v1067 = vshrl.u32 %v1066, 7
    %v1068 = vsub.s32 %v1065, %v1067
    %v1069 = vrot.slane %v1061, %v1068
    %v1071 = vunpack.c.l.s4 1983009808
    %v1072 = vunpack.c.0.s8 %v1071
    %v1073 = vlaneseq
    %v1074 = vshrl.u32 %v1073, 7
    %v1075 = vsub.s32 %v1072, %v1074
    %v1076 = vrot.slane %v1062, %v1075
    %v1077 = vcombine.low %v1017, %v1023
    %v1078 = vcombine.high %v1017, %v1023
    %v1080 = vunpack.c.l.s4 1983009808
    %v1081 = vunpack.c.0.s8 %v1080
    %v1082 = vlaneseq
    %v1083 = vshrl.u32 %v1082, 7
    %v1084 = vsub.s32 %v1081, %v1083
    %v1085 = vrot.slane %v1077, %v1084
    %v1087 = vunpack.c.l.s4 1983009808
    %v1088 = vunpack.c.0.s8 %v1087
    %v1089 = vlaneseq
    %v1090 = vshrl.u32 %v1089, 7
    %v1091 = vsub.s32 %v1088, %v1090
    %v1092 = vrot.slane %v1078, %v1091
    %v1093 = vcombine.low %v1026, %v1032
    %v1094 = vcombine.high %v1026, %v1032
    %v1096 = vunpack.c.l.s4 1983009808
    %v1097 = vunpack.c.0.s8 %v1096
    %v1098 = vlaneseq
    %v1099 = vshrl.u32 %v1098, 7
    %v1100 = vsub.s32 %v1097, %v1099
    %v1101 = vrot.slane %v1093, %v1100
    %v1103 = vunpack.c.l.s4 1983009808
    %v1104 = vunpack.c.0.s8 %v1103
    %v1105 = vlaneseq
    %v1106 = vshrl.u32 %v1105, 7
    %v1107 = vsub.s32 %v1104, %v1106
    %v1108 = vrot.slane %v1094, %v1107
    %v1109 = vcombine.low %v1029, %v1035
    %v1110 = vcombine.high %v1029, %v1035
    %v1112 = vunpack.c.l.s4 1983009808
    %v1113 = vunpack.c.0.s8 %v1112
    %v1114 = vlaneseq
    %v1115 = vshrl.u32 %v1114, 7
    %v1116 = vsub.s32 %v1113, %v1115
    %v1117 = vrot.slane %v1109, %v1116
    %v1119 = vunpack.c.l.s4 1983009808
    %v1120 = vunpack.c.0.s8 %v1119
    %v1121 = vlaneseq
    %v1122 = vshrl.u32 %v1121, 7
    %v1123 = vsub.s32 %v1120, %v1122
    %v1124 = vrot.slane %v1110, %v1123
    %v1125 = vcombine.low %v1069, %v1085
    %v1126 = vcombine.high %v1069, %v1085
    %v1128 = vunpack.c.l.s4 1934713408
    %v1129 = vunpack.c.0.s8 %v1128
    %v1130 = vlaneseq
    %v1131 = vshrl.u32 %v1130, 7
    %v1132 = vsub.s32 %v1129, %v1131
    %v1133 = vrot.slane %v1125, %v1132
    %v1135 = vunpack.c.l.s4 1934713408
    %v1136 = vunpack.c.0.s8 %v1135
    %v1137 = vlaneseq
    %v1138 = vshrl.u32 %v1137, 7
    %v1139 = vsub.s32 %v1136, %v1138
    %v1140 = vrot.slane %v1126, %v1139
    %v1141 = vcombine.low %v1076, %v1092
    %v1142 = vcombine.high %v1076, %v1092
    %v1144 = vunpack.c.l.s4 1934713408
    %v1145 = vunpack.c.0.s8 %v1144
    %v1146 = vlaneseq
    %v1147 = vshrl.u32 %v1146, 7
    %v1148 = vsub.s32 %v1145, %v1147
    %v1149 = vrot.slane %v1141, %v1148
    %v1151 = vunpack.c.l.s4 1934713408
    %v1152 = vunpack.c.0.s8 %v1151
    %v1153 = vlaneseq
    %v1154 = vshrl.u32 %v1153, 7
    %v1155 = vsub.s32 %v1152, %v1154
    %v1156 = vrot.slane %v1142, %v1155
    %v1157 = vcombine.low %v1101, %v1117
    %v1158 = vcombine.high %v1101, %v1117
    %v1160 = vunpack.c.l.s4 1934713408
    %v1161 = vunpack.c.0.s8 %v1160
    %v1162 = vlaneseq
    %v1163 = vshrl.u32 %v1162, 7
    %v1164 = vsub.s32 %v1161, %v1163
    %v1165 = vrot.slane %v1157, %v1164
    %v1167 = vunpack.c.l.s4 1934713408
    %v1168 = vunpack.c.0.s8 %v1167
    %v1169 = vlaneseq
    %v1170 = vshrl.u32 %v1169, 7
    %v1171 = vsub.s32 %v1168, %v1170
    %v1172 = vrot.slane %v1158, %v1171
    %v1173 = vcombine.low %v1108, %v1124
    %v1174 = vcombine.high %v1108, %v1124
    %v1176 = vunpack.c.l.s4 1934713408
    %v1177 = vunpack.c.0.s8 %v1176
    %v1178 = vlaneseq
    %v1179 = vshrl.u32 %v1178, 7
    %v1180 = vsub.s32 %v1177, %v1179
    %v1181 = vrot.slane %v1173, %v1180
    %v1183 = vunpack.c.l.s4 1934713408
    %v1184 = vunpack.c.0.s8 %v1183
    %v1185 = vlaneseq
    %v1186 = vshrl.u32 %v1185, 7
    %v1187 = vsub.s32 %v1184, %v1186
    %v1188 = vrot.slane %v1174, %v1187
    %v1189 = vcombine.low %v1133, %v1165
    %v1190 = vcombine.high %v1133, %v1165
    %v1191 = vcombine.low %v1140, %v1172
    %v1192 = vcombine.high %v1140, %v1172
    %v1193 = vcombine.low %v1149, %v1181
    %v1194 = vcombine.high %v1149, %v1181
    %v1195 = vcombine.low %v1156, %v1188
    %v1196 = vcombine.high %v1156, %v1188
    %v1197 = vcombine.low %v1038, %v1044
    %v1198 = vcombine.high %v1038, %v1044
    %v1200 = vunpack.c.l.s4 1983009808
    %v1201 = vunpack.c.0.s8 %v1200
    %v1202 = vlaneseq
    %v1203 = vshrl.u32 %v1202, 7
    %v1204 = vsub.s32 %v1201, %v1203
    %v1205 = vrot.slane %v1197, %v1204
    %v1207 = vunpack.c.l.s4 1983009808
    %v1208 = vunpack.c.0.s8 %v1207
    %v1209 = vlaneseq
    %v1210 = vshrl.u32 %v1209, 7
    %v1211 = vsub.s32 %v1208, %v1210
    %v1212 = vrot.slane %v1198, %v1211
    %v1213 = vcombine.low %v1041, %v1047
    %v1214 = vcombine.high %v1041, %v1047
    %v1216 = vunpack.c.l.s4 1983009808
    %v1217 = vunpack.c.0.s8 %v1216
    %v1218 = vlaneseq
    %v1219 = vshrl.u32 %v1218, 7
    %v1220 = vsub.s32 %v1217, %v1219
    %v1221 = vrot.slane %v1213, %v1220
    %v1223 = vunpack.c.l.s4 1983009808
    %v1224 = vunpack.c.0.s8 %v1223
    %v1225 = vlaneseq
    %v1226 = vshrl.u32 %v1225, 7
    %v1227 = vsub.s32 %v1224, %v1226
    %v1228 = vrot.slane %v1214, %v1227
    %v1229 = vcombine.low %v1050, %v1056
    %v1230 = vcombine.high %v1050, %v1056
    %v1232 = vunpack.c.l.s4 1983009808
    %v1233 = vunpack.c.0.s8 %v1232
    %v1234 = vlaneseq
    %v1235 = vshrl.u32 %v1234, 7
    %v1236 = vsub.s32 %v1233, %v1235
    %v1237 = vrot.slane %v1229, %v1236
    %v1239 = vunpack.c.l.s4 1983009808
    %v1240 = vunpack.c.0.s8 %v1239
    %v1241 = vlaneseq
    %v1242 = vshrl.u32 %v1241, 7
    %v1243 = vsub.s32 %v1240, %v1242
    %v1244 = vrot.slane %v1230, %v1243
    %v1245 = vcombine.low %v1053, %v1059
    %v1246 = vcombine.high %v1053, %v1059
    %v1248 = vunpack.c.l.s4 1983009808
    %v1249 = vunpack.c.0.s8 %v1248
    %v1250 = vlaneseq
    %v1251 = vshrl.u32 %v1250, 7
    %v1252 = vsub.s32 %v1249, %v1251
    %v1253 = vrot.slane %v1245, %v1252
    %v1255 = vunpack.c.l.s4 1983009808
    %v1256 = vunpack.c.0.s8 %v1255
    %v1257 = vlaneseq
    %v1258 = vshrl.u32 %v1257, 7
    %v1259 = vsub.s32 %v1256, %v1258
    %v1260 = vrot.slane %v1246, %v1259
    %v1261 = vcombine.low %v1205, %v1221
    %v1262 = vcombine.high %v1205, %v1221
    %v1264 = vunpack.c.l.s4 1934713408
    %v1265 = vunpack.c.0.s8 %v1264
    %v1266 = vlaneseq
    %v1267 = vshrl.u32 %v1266, 7
    %v1268 = vsub.s32 %v1265, %v1267
    %v1269 = vrot.slane %v1261, %v1268
    %v1271 = vunpack.c.l.s4 1934713408
    %v1272 = vunpack.c.0.s8 %v1271
    %v1273 = vlaneseq
    %v1274 = vshrl.u32 %v1273, 7
    %v1275 = vsub.s32 %v1272, %v1274
    %v1276 = vrot.slane %v1262, %v1275
    %v1277 = vcombine.low %v1212, %v1228
    %v1278 = vcombine.high %v1212, %v1228
    %v1280 = vunpack.c.l.s4 1934713408
    %v1281 = vunpack.c.0.s8 %v1280
    %v1282 = vlaneseq
    %v1283 = vshrl.u32 %v1282, 7
    %v1284 = vsub.s32 %v1281, %v1283
    %v1285 = vrot.slane %v1277, %v1284
    %v1287 = vunpack.c.l.s4 1934713408
    %v1288 = vunpack.c.0.s8 %v1287
    %v1289 = vlaneseq
    %v1290 = vshrl.u32 %v1289, 7
    %v1291 = vsub.s32 %v1288, %v1290
    %v1292 = vrot.slane %v1278, %v1291
    %v1293 = vcombine.low %v1237, %v1253
    %v1294 = vcombine.high %v1237, %v1253
    %v1296 = vunpack.c.l.s4 1934713408
    %v1297 = vunpack.c.0.s8 %v1296
    %v1298 = vlaneseq
    %v1299 = vshrl.u32 %v1298, 7
    %v1300 = vsub.s32 %v1297, %v1299
    %v1301 = vrot.slane %v1293, %v1300
    %v1303 = vunpack.c.l.s4 1934713408
    %v1304 = vunpack.c.0.s8 %v1303
    %v1305 = vlaneseq
    %v1306 = vshrl.u32 %v1305, 7
    %v1307 = vsub.s32 %v1304, %v1306
    %v1308 = vrot.slane %v1294, %v1307
    %v1309 = vcombine.low %v1244, %v1260
    %v1310 = vcombine.high %v1244, %v1260
    %v1312 = vunpack.c.l.s4 1934713408
    %v1313 = vunpack.c.0.s8 %v1312
    %v1314 = vlaneseq
    %v1315 = vshrl.u32 %v1314, 7
    %v1316 = vsub.s32 %v1313, %v1315
    %v1317 = vrot.slane %v1309, %v1316
    %v1319 = vunpack.c.l.s4 1934713408
    %v1320 = vunpack.c.0.s8 %v1319
    %v1321 = vlaneseq
    %v1322 = vshrl.u32 %v1321, 7
    %v1323 = vsub.s32 %v1320, %v1322
    %v1324 = vrot.slane %v1310, %v1323
    %v1325 = vcombine.low %v1269, %v1301
    %v1326 = vcombine.high %v1269, %v1301
    %v1327 = vcombine.low %v1276, %v1308
    %v1328 = vcombine.high %v1276, %v1308
    %v1329 = vcombine.low %v1285, %v1317
    %v1330 = vcombine.high %v1285, %v1317
    %v1331 = vcombine.low %v1292, %v1324
    %v1332 = vcombine.high %v1292, %v1324
    %vm1333 = vcmask 64512
    %v1334 = vsel %vm1333, %v1189, -inf
    %1335 = vmax.xlane.f32.xlu0 %v1334
    %v1336 = vpop.xlane.xlu0 %1335
    %v1337 = vsel %vm1333, %v1325, -inf
    %1338 = vmax.xlane.f32.xlu0 %v1337
    %v1339 = vpop.xlane.xlu0 %1338
    %v1340 = vsel %vm1333, %v1190, -inf
    %1341 = vmax.xlane.f32.xlu0 %v1340
    %v1342 = vpop.xlane.xlu0 %1341
    %v1343 = vsel %vm1333, %v1326, -inf
    %1344 = vmax.xlane.f32.xlu0 %v1343
    %v1345 = vpop.xlane.xlu0 %1344
    %v1346 = vsel %vm1333, %v1191, -inf
    %1347 = vmax.xlane.f32.xlu0 %v1346
    %v1348 = vpop.xlane.xlu0 %1347
    %v1349 = vsel %vm1333, %v1327, -inf
    %1350 = vmax.xlane.f32.xlu0 %v1349
    %v1351 = vpop.xlane.xlu0 %1350
    %v1352 = vsel %vm1333, %v1192, -inf
    %1353 = vmax.xlane.f32.xlu0 %v1352
    %v1354 = vpop.xlane.xlu0 %1353
    %v1355 = vsel %vm1333, %v1328, -inf
    %1356 = vmax.xlane.f32.xlu0 %v1355
    %v1357 = vpop.xlane.xlu0 %1356
    %v1358 = vsel %vm1333, %v1193, -inf
    %1359 = vmax.xlane.f32.xlu0 %v1358
    %v1360 = vpop.xlane.xlu0 %1359
    %v1361 = vsel %vm1333, %v1329, -inf
    %1362 = vmax.xlane.f32.xlu0 %v1361
    %v1363 = vpop.xlane.xlu0 %1362
    %v1364 = vsel %vm1333, %v1194, -inf
    %1365 = vmax.xlane.f32.xlu0 %v1364
    %v1366 = vpop.xlane.xlu0 %1365
    %v1367 = vsel %vm1333, %v1330, -inf
    %1368 = vmax.xlane.f32.xlu0 %v1367
    %v1369 = vpop.xlane.xlu0 %1368
    %v1370 = vsel %vm1333, %v1195, -inf
    %1371 = vmax.xlane.f32.xlu0 %v1370
    %v1372 = vpop.xlane.xlu0 %1371
    %v1373 = vsel %vm1333, %v1331, -inf
    %1374 = vmax.xlane.f32.xlu0 %v1373
    %v1375 = vpop.xlane.xlu0 %1374
    %v1376 = vsel %vm1333, %v1196, -inf
    %1377 = vmax.xlane.f32.xlu0 %v1376
    %v1378 = vpop.xlane.xlu0 %1377
    %v1379 = vsel %vm1333, %v1332, -inf
    %1380 = vmax.xlane.f32.xlu0 %v1379
    %v1381 = vpop.xlane.xlu0 %1380
    %v1382 = vcombine.low %v1336, %v1348
    %v1383 = vcombine.high %v1336, %v1348
    %v1385 = vunpack.c.l.s4 1983009808
    %v1386 = vunpack.c.0.s8 %v1385
    %v1387 = vlaneseq
    %v1388 = vshrl.u32 %v1387, 7
    %v1389 = vsub.s32 %v1386, %v1388
    %v1390 = vrot.slane %v1382, %v1389
    %v1392 = vunpack.c.l.s4 1983009808
    %v1393 = vunpack.c.0.s8 %v1392
    %v1394 = vlaneseq
    %v1395 = vshrl.u32 %v1394, 7
    %v1396 = vsub.s32 %v1393, %v1395
    %v1397 = vrot.slane %v1383, %v1396
    %v1398 = vcombine.low %v1342, %v1354
    %v1399 = vcombine.high %v1342, %v1354
    %v1401 = vunpack.c.l.s4 1983009808
    %v1402 = vunpack.c.0.s8 %v1401
    %v1403 = vlaneseq
    %v1404 = vshrl.u32 %v1403, 7
    %v1405 = vsub.s32 %v1402, %v1404
    %v1406 = vrot.slane %v1398, %v1405
    %v1408 = vunpack.c.l.s4 1983009808
    %v1409 = vunpack.c.0.s8 %v1408
    %v1410 = vlaneseq
    %v1411 = vshrl.u32 %v1410, 7
    %v1412 = vsub.s32 %v1409, %v1411
    %v1413 = vrot.slane %v1399, %v1412
    %v1414 = vcombine.low %v1360, %v1372
    %v1415 = vcombine.high %v1360, %v1372
    %v1417 = vunpack.c.l.s4 1983009808
    %v1418 = vunpack.c.0.s8 %v1417
    %v1419 = vlaneseq
    %v1420 = vshrl.u32 %v1419, 7
    %v1421 = vsub.s32 %v1418, %v1420
    %v1422 = vrot.slane %v1414, %v1421
    %v1424 = vunpack.c.l.s4 1983009808
    %v1425 = vunpack.c.0.s8 %v1424
    %v1426 = vlaneseq
    %v1427 = vshrl.u32 %v1426, 7
    %v1428 = vsub.s32 %v1425, %v1427
    %v1429 = vrot.slane %v1415, %v1428
    %v1430 = vcombine.low %v1366, %v1378
    %v1431 = vcombine.high %v1366, %v1378
    %v1433 = vunpack.c.l.s4 1983009808
    %v1434 = vunpack.c.0.s8 %v1433
    %v1435 = vlaneseq
    %v1436 = vshrl.u32 %v1435, 7
    %v1437 = vsub.s32 %v1434, %v1436
    %v1438 = vrot.slane %v1430, %v1437
    %v1440 = vunpack.c.l.s4 1983009808
    %v1441 = vunpack.c.0.s8 %v1440
    %v1442 = vlaneseq
    %v1443 = vshrl.u32 %v1442, 7
    %v1444 = vsub.s32 %v1441, %v1443
    %v1445 = vrot.slane %v1431, %v1444
    %v1446 = vcombine.low %v1390, %v1406
    %v1447 = vcombine.high %v1390, %v1406
    %v1449 = vunpack.c.l.s4 1934713408
    %v1450 = vunpack.c.0.s8 %v1449
    %v1451 = vlaneseq
    %v1452 = vshrl.u32 %v1451, 7
    %v1453 = vsub.s32 %v1450, %v1452
    %v1454 = vrot.slane %v1446, %v1453
    %v1456 = vunpack.c.l.s4 1934713408
    %v1457 = vunpack.c.0.s8 %v1456
    %v1458 = vlaneseq
    %v1459 = vshrl.u32 %v1458, 7
    %v1460 = vsub.s32 %v1457, %v1459
    %v1461 = vrot.slane %v1447, %v1460
    %v1462 = vcombine.low %v1397, %v1413
    %v1463 = vcombine.high %v1397, %v1413
    %v1465 = vunpack.c.l.s4 1934713408
    %v1466 = vunpack.c.0.s8 %v1465
    %v1467 = vlaneseq
    %v1468 = vshrl.u32 %v1467, 7
    %v1469 = vsub.s32 %v1466, %v1468
    %v1470 = vrot.slane %v1462, %v1469
    %v1472 = vunpack.c.l.s4 1934713408
    %v1473 = vunpack.c.0.s8 %v1472
    %v1474 = vlaneseq
    %v1475 = vshrl.u32 %v1474, 7
    %v1476 = vsub.s32 %v1473, %v1475
    %v1477 = vrot.slane %v1463, %v1476
    %v1478 = vcombine.low %v1422, %v1438
    %v1479 = vcombine.high %v1422, %v1438
    %v1481 = vunpack.c.l.s4 1934713408
    %v1482 = vunpack.c.0.s8 %v1481
    %v1483 = vlaneseq
    %v1484 = vshrl.u32 %v1483, 7
    %v1485 = vsub.s32 %v1482, %v1484
    %v1486 = vrot.slane %v1478, %v1485
    %v1488 = vunpack.c.l.s4 1934713408
    %v1489 = vunpack.c.0.s8 %v1488
    %v1490 = vlaneseq
    %v1491 = vshrl.u32 %v1490, 7
    %v1492 = vsub.s32 %v1489, %v1491
    %v1493 = vrot.slane %v1479, %v1492
    %v1494 = vcombine.low %v1429, %v1445
    %v1495 = vcombine.high %v1429, %v1445
    %v1497 = vunpack.c.l.s4 1934713408
    %v1498 = vunpack.c.0.s8 %v1497
    %v1499 = vlaneseq
    %v1500 = vshrl.u32 %v1499, 7
    %v1501 = vsub.s32 %v1498, %v1500
    %v1502 = vrot.slane %v1494, %v1501
    %v1504 = vunpack.c.l.s4 1934713408
    %v1505 = vunpack.c.0.s8 %v1504
    %v1506 = vlaneseq
    %v1507 = vshrl.u32 %v1506, 7
    %v1508 = vsub.s32 %v1505, %v1507
    %v1509 = vrot.slane %v1495, %v1508
    %v1510 = vcombine.low %v1454, %v1486
    %v1511 = vcombine.high %v1454, %v1486
    %v1512 = vcombine.low %v1461, %v1493
    %v1513 = vcombine.high %v1461, %v1493
    %v1514 = vcombine.low %v1470, %v1502
    %v1515 = vcombine.high %v1470, %v1502
    %v1516 = vcombine.low %v1477, %v1509
    %v1517 = vcombine.high %v1477, %v1509
    %v1518 = vcombine.low %v1339, %v1351
    %v1519 = vcombine.high %v1339, %v1351
    %v1521 = vunpack.c.l.s4 1983009808
    %v1522 = vunpack.c.0.s8 %v1521
    %v1523 = vlaneseq
    %v1524 = vshrl.u32 %v1523, 7
    %v1525 = vsub.s32 %v1522, %v1524
    %v1526 = vrot.slane %v1518, %v1525
    %v1528 = vunpack.c.l.s4 1983009808
    %v1529 = vunpack.c.0.s8 %v1528
    %v1530 = vlaneseq
    %v1531 = vshrl.u32 %v1530, 7
    %v1532 = vsub.s32 %v1529, %v1531
    %v1533 = vrot.slane %v1519, %v1532
    %v1534 = vcombine.low %v1345, %v1357
    %v1535 = vcombine.high %v1345, %v1357
    %v1537 = vunpack.c.l.s4 1983009808
    %v1538 = vunpack.c.0.s8 %v1537
    %v1539 = vlaneseq
    %v1540 = vshrl.u32 %v1539, 7
    %v1541 = vsub.s32 %v1538, %v1540
    %v1542 = vrot.slane %v1534, %v1541
    %v1544 = vunpack.c.l.s4 1983009808
    %v1545 = vunpack.c.0.s8 %v1544
    %v1546 = vlaneseq
    %v1547 = vshrl.u32 %v1546, 7
    %v1548 = vsub.s32 %v1545, %v1547
    %v1549 = vrot.slane %v1535, %v1548
    %v1550 = vcombine.low %v1363, %v1375
    %v1551 = vcombine.high %v1363, %v1375
    %v1553 = vunpack.c.l.s4 1983009808
    %v1554 = vunpack.c.0.s8 %v1553
    %v1555 = vlaneseq
    %v1556 = vshrl.u32 %v1555, 7
    %v1557 = vsub.s32 %v1554, %v1556
    %v1558 = vrot.slane %v1550, %v1557
    %v1560 = vunpack.c.l.s4 1983009808
    %v1561 = vunpack.c.0.s8 %v1560
    %v1562 = vlaneseq
    %v1563 = vshrl.u32 %v1562, 7
    %v1564 = vsub.s32 %v1561, %v1563
    %v1565 = vrot.slane %v1551, %v1564
    %v1566 = vcombine.low %v1369, %v1381
    %v1567 = vcombine.high %v1369, %v1381
    %v1569 = vunpack.c.l.s4 1983009808
    %v1570 = vunpack.c.0.s8 %v1569
    %v1571 = vlaneseq
    %v1572 = vshrl.u32 %v1571, 7
    %v1573 = vsub.s32 %v1570, %v1572
    %v1574 = vrot.slane %v1566, %v1573
    %v1576 = vunpack.c.l.s4 1983009808
    %v1577 = vunpack.c.0.s8 %v1576
    %v1578 = vlaneseq
    %v1579 = vshrl.u32 %v1578, 7
    %v1580 = vsub.s32 %v1577, %v1579
    %v1581 = vrot.slane %v1567, %v1580
    %v1582 = vcombine.low %v1526, %v1542
    %v1583 = vcombine.high %v1526, %v1542
    %v1585 = vunpack.c.l.s4 1934713408
    %v1586 = vunpack.c.0.s8 %v1585
    %v1587 = vlaneseq
    %v1588 = vshrl.u32 %v1587, 7
    %v1589 = vsub.s32 %v1586, %v1588
    %v1590 = vrot.slane %v1582, %v1589
    %v1592 = vunpack.c.l.s4 1934713408
    %v1593 = vunpack.c.0.s8 %v1592
    %v1594 = vlaneseq
    %v1595 = vshrl.u32 %v1594, 7
    %v1596 = vsub.s32 %v1593, %v1595
    %v1597 = vrot.slane %v1583, %v1596
    %v1598 = vcombine.low %v1533, %v1549
    %v1599 = vcombine.high %v1533, %v1549
    %v1601 = vunpack.c.l.s4 1934713408
    %v1602 = vunpack.c.0.s8 %v1601
    %v1603 = vlaneseq
    %v1604 = vshrl.u32 %v1603, 7
    %v1605 = vsub.s32 %v1602, %v1604
    %v1606 = vrot.slane %v1598, %v1605
    %v1608 = vunpack.c.l.s4 1934713408
    %v1609 = vunpack.c.0.s8 %v1608
    %v1610 = vlaneseq
    %v1611 = vshrl.u32 %v1610, 7
    %v1612 = vsub.s32 %v1609, %v1611
    %v1613 = vrot.slane %v1599, %v1612
    %v1614 = vcombine.low %v1558, %v1574
    %v1615 = vcombine.high %v1558, %v1574
    %v1617 = vunpack.c.l.s4 1934713408
    %v1618 = vunpack.c.0.s8 %v1617
    %v1619 = vlaneseq
    %v1620 = vshrl.u32 %v1619, 7
    %v1621 = vsub.s32 %v1618, %v1620
    %v1622 = vrot.slane %v1614, %v1621
    %v1624 = vunpack.c.l.s4 1934713408
    %v1625 = vunpack.c.0.s8 %v1624
    %v1626 = vlaneseq
    %v1627 = vshrl.u32 %v1626, 7
    %v1628 = vsub.s32 %v1625, %v1627
    %v1629 = vrot.slane %v1615, %v1628
    %v1630 = vcombine.low %v1565, %v1581
    %v1631 = vcombine.high %v1565, %v1581
    %v1633 = vunpack.c.l.s4 1934713408
    %v1634 = vunpack.c.0.s8 %v1633
    %v1635 = vlaneseq
    %v1636 = vshrl.u32 %v1635, 7
    %v1637 = vsub.s32 %v1634, %v1636
    %v1638 = vrot.slane %v1630, %v1637
    %v1640 = vunpack.c.l.s4 1934713408
    %v1641 = vunpack.c.0.s8 %v1640
    %v1642 = vlaneseq
    %v1643 = vshrl.u32 %v1642, 7
    %v1644 = vsub.s32 %v1641, %v1643
    %v1645 = vrot.slane %v1631, %v1644
    %v1646 = vcombine.low %v1590, %v1622
    %v1647 = vcombine.high %v1590, %v1622
    %v1648 = vcombine.low %v1597, %v1629
    %v1649 = vcombine.high %v1597, %v1629
    %v1650 = vcombine.low %v1606, %v1638
    %v1651 = vcombine.high %v1606, %v1638
    %v1652 = vcombine.low %v1613, %v1645
    %v1653 = vcombine.high %v1613, %v1645
    %1655 = vrot.lane.b32.xlu0 %v1511, 8
    %v1656 = vpop.permute.xlu0 %1655
    %1659 = vrot.lane.b32.xlu0 %v1512, 16
    %v1660 = vpop.permute.xlu0 %1659
    %1663 = vrot.lane.b32.xlu0 %v1513, 24
    %v1664 = vpop.permute.xlu0 %1663
    %1667 = vrot.lane.b32.xlu0 %v1514, 32
    %v1668 = vpop.permute.xlu0 %1667
    %1671 = vrot.lane.b32.xlu0 %v1515, 40
    %v1672 = vpop.permute.xlu0 %1671
    %1675 = vrot.lane.b32.xlu0 %v1516, 48
    %v1676 = vpop.permute.xlu0 %1675
    %1679 = vrot.lane.b32.xlu0 %v1517, 56
    %v1680 = vpop.permute.xlu0 %1679
    %1683 = vrot.lane.b32.xlu0 %v1646, 64
    %v1684 = vpop.permute.xlu0 %1683
    %1687 = vrot.lane.b32.xlu0 %v1647, 72
    %v1688 = vpop.permute.xlu0 %1687
    %1691 = vrot.lane.b32.xlu0 %v1648, 80
    %v1692 = vpop.permute.xlu0 %1691
    %1695 = vrot.lane.b32.xlu0 %v1649, 88
    %v1696 = vpop.permute.xlu0 %1695
    %1699 = vrot.lane.b32.xlu0 %v1650, 96
    %v1700 = vpop.permute.xlu0 %1699
    %1703 = vrot.lane.b32.xlu0 %v1651, 104
    %v1704 = vpop.permute.xlu0 %1703
    %1707 = vrot.lane.b32.xlu0 %v1652, 112
    %v1708 = vpop.permute.xlu0 %1707
    %1711 = vrot.lane.b32.xlu0 %v1653, 120
    %v1712 = vpop.permute.xlu0 %1711
    %v1714 = vsel %vm1333, %v1510, %v1656
    %vm1715 = vcmask 130048
    %v1716 = vsel %vm1715, %v1714, %v1660
    %vm1717 = vcmask 195584
    %v1718 = vsel %vm1717, %v1716, %v1664
    %vm1719 = vcmask 261120
    %v1720 = vsel %vm1719, %v1718, %v1668
    %vm1721 = vcmask 326656
    %v1722 = vsel %vm1721, %v1720, %v1672
    %vm1723 = vcmask 392192
    %v1724 = vsel %vm1723, %v1722, %v1676
    %vm1725 = vcmask 457728
    %v1726 = vsel %vm1725, %v1724, %v1680
    %vm1727 = vcmask 523264
    %v1728 = vsel %vm1727, %v1726, %v1684
    %vm1729 = vcmask 588800
    %v1730 = vsel %vm1729, %v1728, %v1688
    %vm1731 = vcmask 654336
    %v1732 = vsel %vm1731, %v1730, %v1692
    %vm1733 = vcmask 719872
    %v1734 = vsel %vm1733, %v1732, %v1696
    %vm1735 = vcmask 785408
    %v1736 = vsel %vm1735, %v1734, %v1700
    %vm1737 = vcmask 850944
    %v1738 = vsel %vm1737, %v1736, %v1704
    %vm1739 = vcmask 916480
    %v1740 = vsel %vm1739, %v1738, %v1708
    %vm1741 = vcmask 982016
    %v1742 = vsel %vm1741, %v1740, %v1712
    %v1743 = vsub.f32 %v1013, %v1742
    %v1744 = vmul.f32 %v1743, 1.442695
    %v1745 = vpow.pop %v1744
    %v1746 = vld [vmem:[#allocation12] sm:$0xff]
    %v1747 = vld [vmem:[#allocation12 + $0x8] sm:$0xff]
    %v1748 = vld [vmem:[#allocation12 + $0x10] sm:$0xff]
    %v1749 = vld [vmem:[#allocation12 + $0x18] sm:$0xff]
    %v1750 = vld [vmem:[#allocation12 + $0x20] sm:$0xff]
    %v1751 = vld [vmem:[#allocation12 + $0x28] sm:$0xff]
    %v1752 = vld [vmem:[#allocation12 + $0x30] sm:$0xff]
    %v1753 = vld [vmem:[#allocation12 + $0x38] sm:$0xff]
    %v1754 = vld [vmem:[#allocation12 + $0x40] sm:$0xff]
    %v1755 = vld [vmem:[#allocation12 + $0x48] sm:$0xff]
    %v1756 = vld [vmem:[#allocation12 + $0x50] sm:$0xff]
    %v1757 = vld [vmem:[#allocation12 + $0x58] sm:$0xff]
    %v1758 = vld [vmem:[#allocation12 + $0x60] sm:$0xff]
    %v1759 = vld [vmem:[#allocation12 + $0x68] sm:$0xff]
    %v1760 = vld [vmem:[#allocation12 + $0x70] sm:$0xff]
    %v1761 = vld [vmem:[#allocation12 + $0x78] sm:$0xff]
    %1762 = vmatprep.subr.mxu0 0.0
    %1763 = vmatpush1.msra.mxu0 %v1746
    %1764 = vmatprep.subr.mxu0 0.0
    %1765 = vmatpush1.msra.mxu0 %v1747
    %1766 = vmatprep.subr.mxu0 0.0
    %1767 = vmatpush1.msra.mxu0 %v1748
    %1768 = vmatprep.subr.mxu0 0.0
    %1769 = vmatpush1.msra.mxu0 %v1749
    %1770 = vmatprep.subr.mxu0 0.0
    %1771 = vmatpush1.msra.mxu0 %v1750
    %1772 = vmatprep.subr.mxu0 0.0
    %1773 = vmatpush1.msra.mxu0 %v1751
    %1774 = vmatprep.subr.mxu0 0.0
    %1775 = vmatpush1.msra.mxu0 %v1752
    %1776 = vmatprep.subr.mxu0 0.0
    %1777 = vmatpush1.msra.mxu0 %v1753
    %1778 = vmatprep.subr.mxu0 0.0
    %1779 = vmatpush1.msra.mxu0 %v1754
    %1780 = vmatprep.subr.mxu0 0.0
    %1781 = vmatpush1.msra.mxu0 %v1755
    %1782 = vmatprep.subr.mxu0 0.0
    %1783 = vmatpush1.msra.mxu0 %v1756
    %1784 = vmatprep.subr.mxu0 0.0
    %1785 = vmatpush1.msra.mxu0 %v1757
    %1786 = vmatprep.subr.mxu0 0.0
    %1787 = vmatpush1.msra.mxu0 %v1758
    %1788 = vmatprep.subr.mxu0 0.0
    %1789 = vmatpush1.msra.mxu0 %v1759
    %1790 = vmatprep.subr.mxu0 0.0
    %1791 = vmatpush1.msra.mxu0 %v1760
    %1792 = vmatprep.subr.mxu0 0.0
    %1793 = vmatpush1.msra.mxu0 %v1761
    %1794 = vmatprep.subr.mxu0 0.0
    %1795 = vmatpush1.msra.mxu0 0.0
    %1796 = vmatprep.subr.mxu0 0.0
    %1797 = vmatpush1.msra.mxu0 0.0
    %1798 = vmatprep.subr.mxu0 0.0
    %1799 = vmatpush1.msra.mxu0 0.0
    %1800 = vmatprep.subr.mxu0 0.0
    %1801 = vmatpush1.msra.mxu0 0.0
    %1802 = vmatprep.subr.mxu0 0.0
    %1803 = vmatpush1.msra.mxu0 0.0
    %1804 = vmatprep.subr.mxu0 0.0
    %1805 = vmatpush1.msra.mxu0 0.0
    %1806 = vmatprep.subr.mxu0 0.0
    %1807 = vmatpush1.msra.mxu0 0.0
    %1808 = vmatprep.subr.mxu0 0.0
    %1809 = vmatpush1.msra.mxu0 0.0
    %1810 = vmatprep.subr.mxu0 0.0
    %1811 = vmatpush1.msra.mxu0 0.0
    %1812 = vmatprep.subr.mxu0 0.0
    %1813 = vmatpush1.msra.mxu0 0.0
    %1814 = vmatprep.subr.mxu0 0.0
    %1815 = vmatpush1.msra.mxu0 0.0
    %1816 = vmatprep.subr.mxu0 0.0
    %1817 = vmatpush1.msra.mxu0 0.0
    %1818 = vmatprep.subr.mxu0 0.0
    %1819 = vmatpush1.msra.mxu0 0.0
    %1820 = vmatprep.subr.mxu0 0.0
    %1821 = vmatpush1.msra.mxu0 0.0
    %1822 = vmatprep.subr.mxu0 0.0
    %1823 = vmatpush1.msra.mxu0 0.0
    %1824 = vmatprep.subr.mxu0 0.0
    %1825 = vmatpush1.msra.mxu0 0.0
    %1826 = vmatprep.mubr.f32.mxu0 0.0
    %1827 = vmatmul.mubr.f32.gmra.mrb[0].mxu0 %v1745
    %v1828 = vpop.f32.mrb[0].mxu0
    %v1829 = vadd.f32 0.0, %v1828
    %v1830 = vpop.f32.mrb[0].mxu0
    %1831 = vdwg.mxu0
    %v1832 = vrcp.pop %v1829
    %v1833 = vmul.f32 %v1745, %v1832
    %1834 = vst [vmem:[%s17] sm:$0xff] %v1833
    // Predicated region
    $region94: #{rnn_transition_forward.1} parent=1 // pred_check
      _
    $region95: #{rnn_transition_forward.1} parent=1 // pred_check_branch
      %1836 = sbr.rel (0) target = $region97
    $region96: #{rnn_transition_forward.1} parent=1 // pred_region
      _
    $region97: #{rnn_transition_forward.1} parent=1 // pred_fallthru
      _
    // Predicated region
    $region98: #{rnn_transition_forward.1} parent=1 // pred_check
      _
    $region99: #{rnn_transition_forward.1} parent=1 // pred_check_branch
      %1838 = sbr.rel (0) target = $region101
    $region100: #{rnn_transition_forward.1} parent=1 // pred_region
      _
    $region101: #{rnn_transition_forward.1} parent=1 // pred_fallthru
      _
    // Predicated region
    $region102: #{rnn_transition_forward.1} parent=1 // pred_check
      _
    $region103: #{rnn_transition_forward.1} parent=1 // pred_check_branch
      %1840 = sbr.rel (0) target = $region105
    $region104: #{rnn_transition_forward.1} parent=1 // pred_region
      _
    $region105: #{rnn_transition_forward.1} parent=1 // pred_fallthru
      _
    // Predicated region
    $region106: #{rnn_transition_forward.1} parent=1 // pred_check
      _
    $region107: #{rnn_transition_forward.1} parent=1 // pred_check_branch
      %1842 = sbr.rel (0) target = $region109
    $region108: #{rnn_transition_forward.1} parent=1 // pred_region
      _
    $region109: #{rnn_transition_forward.1} parent=1 // pred_fallthru
      _
    %1843 = vsyncpa [#allocation3], 1
    %1844 = vsyncpa [#allocation5], 1
    %1845 = vsyncpa [#allocation8], 1
    %1846 = vsyncpa [#allocation11], 1

</llo_original>
